<compile_context>
chip_gen: v7x
topology: tpu7x:2x2x1
jax: 0.10.0
libtpu: 0.0.40
codegen_flags: <defaults>
</compile_context>

<pallas_src>
import functools

import jax
import jax.numpy as jnp
from jax.experimental import pallas as pl
from jax.experimental.pallas import tpu as pltpu


def _round_up(x, m):
    return ((x + m - 1) // m) * m


def _pick_tile(padded_dim, target):
    """Largest multiple of 128 <= target that divides padded_dim (a 128-multiple)."""
    if padded_dim <= target:
        return padded_dim
    t = (target // 128) * 128
    while t > 128 and padded_dim % t != 0:
        t -= 128
    return max(t, 128)


# ---------------------------------------------------------------------------
# Pallas matmul kernels: y = act(x @ w + b), f32 accumulation on the MXU.
# ---------------------------------------------------------------------------
def _mm_kernel_single(x_ref, w_ref, b_ref, o_ref, *, relu):
    # Whole K fits in one tile: no accumulator needed at all.
    y = jnp.dot(x_ref[...], w_ref[...], preferred_element_type=jnp.float32)
    y = y + b_ref[...]
    if relu:
        y = jnp.maximum(y, 0.0)
    o_ref[...] = y.astype(o_ref.dtype)


def _mm_kernel_accum_out(x_ref, w_ref, b_ref, o_ref, *, relu):
    # o_ref is f32 and its index_map ignores k, so the block stays resident in
    # VMEM across the K axis and doubles as the accumulator (saves a scratch
    # tile and the epilogue VMEM->VMEM copy).
    @pl.when(pl.program_id(2) == 0)
    def _():
        o_ref[...] = jnp.zeros_like(o_ref)

    o_ref[...] += jnp.dot(x_ref[...], w_ref[...],
                          preferred_element_type=jnp.float32)

    @pl.when(pl.program_id(2) == pl.num_programs(2) - 1)
    def _():
        y = o_ref[...] + b_ref[...]
        if relu:
            y = jnp.maximum(y, 0.0)
        o_ref[...] = y


def _mm_kernel_scratch(x_ref, w_ref, b_ref, o_ref, acc_ref, *, relu):
    # bf16 output: accumulate in an f32 VMEM scratch, cast once in the epilogue.
    @pl.when(pl.program_id(2) == 0)
    def _():
        acc_ref[...] = jnp.zeros_like(acc_ref)

    acc_ref[...] += jnp.dot(x_ref[...], w_ref[...],
                            preferred_element_type=jnp.float32)

    @pl.when(pl.program_id(2) == pl.num_programs(2) - 1)
    def _():
        y = acc_ref[...] + b_ref[...]
        if relu:
            y = jnp.maximum(y, 0.0)
        o_ref[...] = y.astype(o_ref.dtype)


def linear_pallas(x, layer, n_out, *, relu=False, out_dtype=jnp.bfloat16,
                  tm_target=256, tn_target=512, tk_target=2048):
    """y = relu?(x @ w + b)[:, :n_out].

    `layer["w"]` is a pre-padded, pre-cast bf16 (Kp, Np) weight and
    `layer["b"]` a padded f32 (1, Np) bias (see _prep_linear).  x:(M, K) with
    K <= Kp; x is zero-padded to (Mp, Kp) -- the zero weight rows/cols keep
    this exact.  Only the small activation is touched per forward.
    """
    w, b = layer["w"], layer["b"]
    Kp, Np = w.shape
    M, K = x.shape
    assert K <= Kp and n_out <= Np

    tn = _pick_tile(Np, tn_target)
    tk = _pick_tile(Kp, tk_target)
    tm = _round_up(min(tm_target, _round_up(M, 16)), 16)
    Mp = _round_up(M, tm)

    xb = x if x.dtype == jnp.bfloat16 else x.astype(jnp.bfloat16)
    if (Mp, Kp) != (M, K):
        xb = jnp.pad(xb, ((0, Mp - M), (0, Kp - K)))

    n_k = Kp // tk
    grid = (Mp // tm, Np // tn, n_k)

    out_itemsize = jnp.dtype(out_dtype).itemsize
    cost = pl.CostEstimate(
        flops=2 * Mp * Kp * Np,
        transcendentals=0,
        bytes_accessed=Mp * Kp * 2 + Kp * Np * 2 + Np * 4 + Mp * Np * out_itemsize,
    )

    if n_k == 1:
        kernel = functools.partial(_mm_kernel_single, relu=relu)
        scratch = []
    elif jnp.dtype(out_dtype) == jnp.dtype(jnp.float32):
        kernel = functools.partial(_mm_kernel_accum_out, relu=relu)
        scratch = []
    else:
        kernel = functools.partial(_mm_kernel_scratch, relu=relu)
        scratch = [pltpu.VMEM((tm, tn), jnp.float32)]

    out = pl.pallas_call(
        kernel,
        out_shape=jax.ShapeDtypeStruct((Mp, Np), out_dtype),
        grid_spec=pltpu.PrefetchScalarGridSpec(
            num_scalar_prefetch=0,
            grid=grid,
            in_specs=[
                pl.BlockSpec((tm, tk), lambda i, j, k: (i, k)),
                pl.BlockSpec((tk, tn), lambda i, j, k: (k, j)),
                pl.BlockSpec((1, tn), lambda i, j, k: (0, j)),
            ],
            out_specs=pl.BlockSpec((tm, tn), lambda i, j, k: (i, j)),
            scratch_shapes=scratch,
        ),
        compiler_params=pltpu.CompilerParams(
            dimension_semantics=("parallel", "parallel", "arbitrary"),
            # Largest tile set (fc1: x 256x1792 + w 1792x512 + out, double
            # buffered) stays well under 32 MiB -- safe on every generation,
            # including v7x's 64 MiB physical VMEM.
            vmem_limit_bytes=32 * 1024 * 1024,
        ),
        cost_estimate=cost,
    )(xb, w, b)

    if (Mp, Np) != (M, n_out):
        out = out[:M, :n_out]
    return out


# ---------------------------------------------------------------------------
# CoarseMaskHead forward (matches the PyTorch module semantics)
# ---------------------------------------------------------------------------
def coarse_mask_head_forward(x, params, *, conv_dim, fc_dim, num_classes,
                             output_side_resolution):
    N, C, H, W = x.shape
    assert H % 2 == 0 and W % 2 == 0, "stride-2 conv path assumes even H, W"
    Ho, Wo = H // 2, W // 2

    # Single layout permutation for the whole forward, done in bf16 so the f32
    # input is read only once:  NCHW -> patch-major (N, Ho, Wo, kh, kw, C).
    xp = jnp.transpose(x.astype(jnp.bfloat16).reshape(N, C, Ho, 2, Wo, 2),
                       (0, 2, 4, 3, 5, 1))

    # --- reduce_channel_dim_conv: 1x1 conv + ReLU (present when Cin > conv_dim)
    if "conv1x1" in params:
        flat = xp.reshape(N * H * W, C)           # rows ordered (n, ho, wo, kh, kw)
        y = linear_pallas(flat, params["conv1x1"], conv_dim, relu=True,
                          out_dtype=jnp.bfloat16, tm_target=1024)
    else:
        assert C == conv_dim
        y = xp.reshape(N * H * W, C)

    # --- reduce_spatial_dim_conv: 2x2/stride-2 conv + ReLU as one matmul.
    # Rows are already (n, ho, wo, kh, kw)-ordered, so the patch matrix is a
    # plain reshape; columns come out (kh, kw, c)-ordered, matching conv2x2 w.
    patches = y.reshape(N * Ho * Wo, 4 * conv_dim)
    y = linear_pallas(patches, params["conv2x2"], conv_dim, relu=True,
                      out_dtype=jnp.bfloat16, tm_target=1024)

    # --- torch.flatten(x, 1): the (c, ho, wo) ordering is folded into fc1's
    # weight rows at construction time, so a plain reshape suffices.
    feat = y.reshape(N, Ho * Wo * conv_dim)

    # --- FC stack (ReLU) then prediction head (no activation).
    # TODO(synk): fuse the FC stack + prediction head into a single pallas_call
    # that keeps the (N, fc_dim) activation resident in VMEM and only streams
    # weights (removes 3-4 launches + activation HBM round trips).
    tm_fc = _round_up(N, 16)
    for layer in params["fcs"]:
        feat = linear_pallas(feat, layer, fc_dim, relu=True,
                             out_dtype=jnp.bfloat16, tm_target=tm_fc)
    out_dim = num_classes * output_side_resolution * output_side_resolution
    out = linear_pallas(feat, params["pred"], out_dim, relu=False,
                        out_dtype=jnp.float32, tm_target=tm_fc)

    return out.reshape(N, num_classes, output_side_resolution,
                       output_side_resolution)


# ---------------------------------------------------------------------------
# Parameter construction: weights stored pre-transposed to (K, N) matmul
# layout, pre-cast to bf16 and pre-padded ONCE here (no per-forward cast/pad).
# ---------------------------------------------------------------------------
def _prep_linear(w, b):
    """(K,N) f32 weight -> padded bf16; (N,) f32 bias -> padded (1,Np) f32."""
    K, N = w.shape
    Kp = _round_up(K, 128)
    # Wide layers round N to 512 so the output splits into >=2 lane-dense
    # 512-wide "parallel" tiles (keeps both v7x TensorCores busy).
    Np = _round_up(N, 512) if N > 512 else _round_up(N, 128)
    wp = jnp.pad(w, ((0, Kp - K), (0, Np - N))).astype(jnp.bfloat16)
    bp = jnp.pad(b.reshape(1, N).astype(jnp.float32), ((0, 0), (0, Np - N)))
    # TODO(synk): optional int8 (v6e) / fp8-e4m3 (v7x) weight storage with
    # per-output-channel scales dequantized in the matmul epilogue.
    return {"w": wp, "b": bp}


def make_params(key, *, input_channels, conv_dim, fc_dim, num_fc,
                input_h, input_w, num_classes, output_side_resolution):
    params = {}
    keys = jax.random.split(key, 3 + num_fc)
    ho, wo = input_h // 2, input_w // 2

    # reduce_channel_dim_conv (only if input_channels > conv_dim):
    # PyTorch weight (conv_dim, Cin, 1, 1) -> stored as (Cin, conv_dim).
    if input_channels > conv_dim:
        w = 0.1 * jax.random.normal(keys[0], (input_channels, conv_dim), jnp.float32)
        params["conv1x1"] = _prep_linear(w, jnp.zeros((conv_dim,), jnp.float32))

    # reduce_spatial_dim_conv: PyTorch weight (co, ci, 2, 2) permuted so rows
    # are (kh, kw, ci)-ordered and the patch reshape needs no transpose.
    w_t = 0.1 * jax.random.normal(keys[1], (conv_dim, conv_dim, 2, 2), jnp.float32)
    w2 = jnp.transpose(w_t, (2, 3, 1, 0)).reshape(4 * conv_dim, conv_dim)
    params["conv2x2"] = _prep_linear(w2, jnp.zeros((conv_dim,), jnp.float32))

    # FC stack.  fc1's PyTorch weight is (fc_dim, c*ho*wo) over a (c,ho,wo)
    # flatten; fold the (ho,wo,c) patch-major ordering into its rows here.
    fcs = []
    w0 = 0.05 * jax.random.normal(keys[2], (fc_dim, conv_dim, ho, wo), jnp.float32)
    w0 = jnp.transpose(w0, (2, 3, 1, 0)).reshape(ho * wo * conv_dim, fc_dim)
    fcs.append(_prep_linear(w0, jnp.zeros((fc_dim,), jnp.float32)))
    for k in range(1, num_fc):
        w = 0.05 * jax.random.normal(keys[2 + k], (fc_dim, fc_dim), jnp.float32)
        fcs.append(_prep_linear(w, jnp.zeros((fc_dim,), jnp.float32)))
    params["fcs"] = fcs

    # prediction: nn.init.normal_(std=0.001), bias 0.
    output_dim = num_classes * output_side_resolution * output_side_resolution
    wp = 0.001 * jax.random.normal(keys[2 + num_fc], (fc_dim, output_dim), jnp.float32)
    params["pred"] = _prep_linear(wp, jnp.zeros((output_dim,), jnp.float32))
    return params


if __name__ == "__main__":
    # Small synthetic config (input_channels > conv_dim exercises the 1x1 conv).
    N = 2
    input_channels, input_h, input_w = 8, 16, 16
    conv_dim, fc_dim, num_fc = 4, 32, 2
    num_classes, output_side_resolution = 4, 7

    key = jax.random.PRNGKey(0)
    k_x, k_p, k_t = jax.random.split(key, 3)

    x = jax.random.normal(k_x, (N, input_channels, input_h, input_w), jnp.float32)
    params = make_params(
        k_p,
        input_channels=input_channels, conv_dim=conv_dim, fc_dim=fc_dim,
        num_fc=num_fc, input_h=input_h, input_w=input_w,
        num_classes=num_classes, output_side_resolution=output_side_resolution)

    fwd = jax.jit(functools.partial(
        coarse_mask_head_forward,
        conv_dim=conv_dim, fc_dim=fc_dim, num_classes=num_classes,
        output_side_resolution=output_side_resolution))

    out = jax.block_until_ready(fwd(x, params))
    assert out.shape == (N, num_classes, output_side_resolution, output_side_resolution)
    assert out.dtype == jnp.float32
    assert bool(jnp.all(jnp.isfinite(out)))

    # Exercise the multi-K kernel variants (scratch accumulator and
    # accumulate-into-f32-output) at small shapes and check against jnp.
    km, kk = jax.random.split(k_t)
    Mt, Kt, Nt = 32, 512, 256
    xt = jax.random.normal(km, (Mt, Kt), jnp.float32)
    wt = 0.05 * jax.random.normal(kk, (Kt, Nt), jnp.float32)
    bt = jnp.linspace(-1.0, 1.0, Nt, dtype=jnp.float32)
    lt = _prep_linear(wt, bt)
    ref = jnp.maximum(
        xt.astype(jnp.bfloat16).astype(jnp.float32)
        @ wt.astype(jnp.bfloat16).astype(jnp.float32) + bt, 0.0)
    got_bf16 = linear_pallas(xt, lt, Nt, relu=True, out_dtype=jnp.bfloat16,
                             tm_target=32, tk_target=128)
    got_f32 = linear_pallas(xt, lt, Nt, relu=True, out_dtype=jnp.float32,
                            tm_target=32, tk_target=128)
    got_bf16 = jax.block_until_ready(got_bf16)
    got_f32 = jax.block_until_ready(got_f32)
    assert bool(jnp.allclose(got_bf16.astype(jnp.float32), ref, rtol=2e-2, atol=2e-2))
    assert bool(jnp.allclose(got_f32, ref, rtol=2e-2, atol=2e-2))

    print("KERNEL_OK")
</pallas_src>

<mosaic_0001>
module attributes {stable_mosaic.version = 11 : i64} {
  func.func @_mm_kernel_single(%arg0: i32, %arg1: i32, %arg2: i32, %arg3: memref<512x128xbf16, #tpu.memory_space<vmem>>, %arg4: memref<128x128xbf16, #tpu.memory_space<vmem>>, %arg5: memref<1x128xf32, #tpu.memory_space<vmem>>, %arg6: memref<512x128xbf16, #tpu.memory_space<vmem>>) attributes {dimension_semantics = [#tpu.dimension_semantics<parallel>, #tpu.dimension_semantics<parallel>, #tpu.dimension_semantics<arbitrary>], iteration_bounds = array<i64: 1, 1, 1>, scalar_prefetch = 0 : i64, scratch_operands = 0 : i64, tpu.core_type = #tpu.core_type<tc>, window_params = [{transform_indices = @transform_0, window_bounds = array<i64: 512, 128>}, {transform_indices = @transform_1, window_bounds = array<i64: 128, 128>}, {transform_indices = @transform_2, window_bounds = array<i64: 1, 128>}, {transform_indices = @transform_3, window_bounds = array<i64: 512, 128>}]} {
    %c0 = arith.constant 0 : index
    %c0_0 = arith.constant 0 : index
    %0 = vector.load %arg3[%c0, %c0_0] : memref<512x128xbf16, #tpu.memory_space<vmem>>, vector<512x128xbf16>
    %c0_1 = arith.constant 0 : index
    %c0_2 = arith.constant 0 : index
    %1 = vector.load %arg4[%c0_1, %c0_2] : memref<128x128xbf16, #tpu.memory_space<vmem>>, vector<128x128xbf16>
    %cst = arith.constant dense<0.000000e+00> : vector<512x128xf32>
    %2 = tpu.matmul %0, %1, %cst {dimension_numbers = #tpu.dot_dimension_numbers<[1], [0], [0], [1], [0, 0, 1, 1], [], []>} : vector<512x128xbf16>, vector<128x128xbf16>, vector<512x128xf32> -> vector<512x128xf32>
    %c0_3 = arith.constant 0 : index
    %c0_4 = arith.constant 0 : index
    %3 = vector.load %arg5[%c0_3, %c0_4] : memref<1x128xf32, #tpu.memory_space<vmem>>, vector<1x128xf32>
    %4 = vector.broadcast %3 : vector<1x128xf32> to vector<512x128xf32>
    %5 = arith.addf %2, %4 : vector<512x128xf32>
    %cst_5 = arith.constant 0.000000e+00 : f32
    %6 = vector.broadcast %cst_5 : f32 to vector<512x128xf32>
    %7 = arith.maximumf %5, %6 : vector<512x128xf32>
    %8 = arith.truncf %7 : vector<512x128xf32> to vector<512x128xbf16>
    %c0_6 = arith.constant 0 : index
    %c0_7 = arith.constant 0 : index
    %9 = vector.load %arg6[%c0_6, %c0_7] : memref<512x128xbf16, #tpu.memory_space<vmem>>, vector<512x128xbf16>
    tpu.vector_store %arg6[%c0_6, %c0_7], %8 {strides = array<i32>} : memref<512x128xbf16, #tpu.memory_space<vmem>>, vector<512x128xbf16>,
    return
  }
  func.func @transform_0(%arg0: i32, %arg1: i32, %arg2: i32) -> (i32, i32) {
    %c0_i32 = arith.constant 0 : i32
    return %arg0, %arg2 : i32, i32
  }
  func.func @transform_1(%arg0: i32, %arg1: i32, %arg2: i32) -> (i32, i32) {
    %c0_i32 = arith.constant 0 : i32
    return %arg2, %arg1 : i32, i32
  }
  func.func @transform_2(%arg0: i32, %arg1: i32, %arg2: i32) -> (i32, i32) {
    %c0_i32 = arith.constant 0 : i32
    %c0_i32_0 = arith.constant 0 : i32
    return %c0_i32, %arg1 : i32, i32
  }
  func.func @transform_3(%arg0: i32, %arg1: i32, %arg2: i32) -> (i32, i32) {
    %c0_i32 = arith.constant 0 : i32
    return %arg0, %arg1 : i32, i32
  }
}

module attributes {stable_mosaic.version = 11 : i64} {
  func.func @_mm_kernel_single(%arg0: i32, %arg1: i32, %arg2: i32, %arg3: memref<128x128xbf16, #tpu.memory_space<vmem>>, %arg4: memref<128x128xbf16, #tpu.memory_space<vmem>>, %arg5: memref<1x128xf32, #tpu.memory_space<vmem>>, %arg6: memref<128x128xbf16, #tpu.memory_space<vmem>>) attributes {dimension_semantics = [#tpu.dimension_semantics<parallel>, #tpu.dimension_semantics<parallel>, #tpu.dimension_semantics<arbitrary>], iteration_bounds = array<i64: 1, 1, 1>, scalar_prefetch = 0 : i64, scratch_operands = 0 : i64, tpu.core_type = #tpu.core_type<tc>, window_params = [{transform_indices = @transform_0, window_bounds = array<i64: 128, 128>}, {transform_indices = @transform_1, window_bounds = array<i64: 128, 128>}, {transform_indices = @transform_2, window_bounds = array<i64: 1, 128>}, {transform_indices = @transform_3, window_bounds = array<i64: 128, 128>}]} {
    %c0 = arith.constant 0 : index
    %c0_0 = arith.constant 0 : index
    %0 = vector.load %arg3[%c0, %c0_0] : memref<128x128xbf16, #tpu.memory_space<vmem>>, vector<128x128xbf16>
    %c0_1 = arith.constant 0 : index
    %c0_2 = arith.constant 0 : index
    %1 = vector.load %arg4[%c0_1, %c0_2] : memref<128x128xbf16, #tpu.memory_space<vmem>>, vector<128x128xbf16>
    %cst = arith.constant dense<0.000000e+00> : vector<128x128xf32>
    %2 = tpu.matmul %0, %1, %cst {dimension_numbers = #tpu.dot_dimension_numbers<[1], [0], [0], [1], [0, 0, 1, 1], [], []>} : vector<128x128xbf16>, vector<128x128xbf16>, vector<128x128xf32> -> vector<128x128xf32>
    %c0_3 = arith.constant 0 : index
    %c0_4 = arith.constant 0 : index
    %3 = vector.load %arg5[%c0_3, %c0_4] : memref<1x128xf32, #tpu.memory_space<vmem>>, vector<1x128xf32>
    %4 = vector.broadcast %3 : vector<1x128xf32> to vector<128x128xf32>
    %5 = arith.addf %2, %4 : vector<128x128xf32>
    %cst_5 = arith.constant 0.000000e+00 : f32
    %6 = vector.broadcast %cst_5 : f32 to vector<128x128xf32>
    %7 = arith.maximumf %5, %6 : vector<128x128xf32>
    %8 = arith.truncf %7 : vector<128x128xf32> to vector<128x128xbf16>
    %c0_6 = arith.constant 0 : index
    %c0_7 = arith.constant 0 : index
    %9 = vector.load %arg6[%c0_6, %c0_7] : memref<128x128xbf16, #tpu.memory_space<vmem>>, vector<128x128xbf16>
    tpu.vector_store %arg6[%c0_6, %c0_7], %8 {strides = array<i32>} : memref<128x128xbf16, #tpu.memory_space<vmem>>, vector<128x128xbf16>,
    return
  }
  func.func @transform_0(%arg0: i32, %arg1: i32, %arg2: i32) -> (i32, i32) {
    %c0_i32 = arith.constant 0 : i32
    return %arg0, %arg2 : i32, i32
  }
  func.func @transform_1(%arg0: i32, %arg1: i32, %arg2: i32) -> (i32, i32) {
    %c0_i32 = arith.constant 0 : i32
    return %arg2, %arg1 : i32, i32
  }
  func.func @transform_2(%arg0: i32, %arg1: i32, %arg2: i32) -> (i32, i32) {
    %c0_i32 = arith.constant 0 : i32
    %c0_i32_0 = arith.constant 0 : i32
    return %c0_i32, %arg1 : i32, i32
  }
  func.func @transform_3(%arg0: i32, %arg1: i32, %arg2: i32) -> (i32, i32) {
    %c0_i32 = arith.constant 0 : i32
    return %arg0, %arg1 : i32, i32
  }
}

module attributes {stable_mosaic.version = 11 : i64} {
  func.func @_mm_kernel_single(%arg0: i32, %arg1: i32, %arg2: i32, %arg3: memref<16x256xbf16, #tpu.memory_space<vmem>>, %arg4: memref<256x128xbf16, #tpu.memory_space<vmem>>, %arg5: memref<1x128xf32, #tpu.memory_space<vmem>>, %arg6: memref<16x128xbf16, #tpu.memory_space<vmem>>) attributes {dimension_semantics = [#tpu.dimension_semantics<parallel>, #tpu.dimension_semantics<parallel>, #tpu.dimension_semantics<arbitrary>], iteration_bounds = array<i64: 1, 1, 1>, scalar_prefetch = 0 : i64, scratch_operands = 0 : i64, tpu.core_type = #tpu.core_type<tc>, window_params = [{transform_indices = @transform_0, window_bounds = array<i64: 16, 256>}, {transform_indices = @transform_1, window_bounds = array<i64: 256, 128>}, {transform_indices = @transform_2, window_bounds = array<i64: 1, 128>}, {transform_indices = @transform_3, window_bounds = array<i64: 16, 128>}]} {
    %c0 = arith.constant 0 : index
    %c0_0 = arith.constant 0 : index
    %0 = vector.load %arg3[%c0, %c0_0] : memref<16x256xbf16, #tpu.memory_space<vmem>>, vector<16x256xbf16>
    %c0_1 = arith.constant 0 : index
    %c0_2 = arith.constant 0 : index
    %1 = vector.load %arg4[%c0_1, %c0_2] : memref<256x128xbf16, #tpu.memory_space<vmem>>, vector<256x128xbf16>
    %cst = arith.constant dense<0.000000e+00> : vector<16x128xf32>
    %2 = tpu.matmul %0, %1, %cst {dimension_numbers = #tpu.dot_dimension_numbers<[1], [0], [0], [1], [0, 0, 1, 1], [], []>} : vector<16x256xbf16>, vector<256x128xbf16>, vector<16x128xf32> -> vector<16x128xf32>
    %c0_3 = arith.constant 0 : index
    %c0_4 = arith.constant 0 : index
    %3 = vector.load %arg5[%c0_3, %c0_4] : memref<1x128xf32, #tpu.memory_space<vmem>>, vector<1x128xf32>
    %4 = vector.broadcast %3 : vector<1x128xf32> to vector<16x128xf32>
    %5 = arith.addf %2, %4 : vector<16x128xf32>
    %cst_5 = arith.constant 0.000000e+00 : f32
    %6 = vector.broadcast %cst_5 : f32 to vector<16x128xf32>
    %7 = arith.maximumf %5, %6 : vector<16x128xf32>
    %8 = arith.truncf %7 : vector<16x128xf32> to vector<16x128xbf16>
    %c0_6 = arith.constant 0 : index
    %c0_7 = arith.constant 0 : index
    %9 = vector.load %arg6[%c0_6, %c0_7] : memref<16x128xbf16, #tpu.memory_space<vmem>>, vector<16x128xbf16>
    tpu.vector_store %arg6[%c0_6, %c0_7], %8 {strides = array<i32>} : memref<16x128xbf16, #tpu.memory_space<vmem>>, vector<16x128xbf16>,
    return
  }
  func.func @transform_0(%arg0: i32, %arg1: i32, %arg2: i32) -> (i32, i32) {
    %c0_i32 = arith.constant 0 : i32
    return %arg0, %arg2 : i32, i32
  }
  func.func @transform_1(%arg0: i32, %arg1: i32, %arg2: i32) -> (i32, i32) {
    %c0_i32 = arith.constant 0 : i32
    return %arg2, %arg1 : i32, i32
  }
  func.func @transform_2(%arg0: i32, %arg1: i32, %arg2: i32) -> (i32, i32) {
    %c0_i32 = arith.constant 0 : i32
    %c0_i32_0 = arith.constant 0 : i32
    return %c0_i32, %arg1 : i32, i32
  }
  func.func @transform_3(%arg0: i32, %arg1: i32, %arg2: i32) -> (i32, i32) {
    %c0_i32 = arith.constant 0 : i32
    return %arg0, %arg1 : i32, i32
  }
}

module attributes {stable_mosaic.version = 11 : i64} {
  func.func @_mm_kernel_single(%arg0: i32, %arg1: i32, %arg2: i32, %arg3: memref<16x128xbf16, #tpu.memory_space<vmem>>, %arg4: memref<128x256xbf16, #tpu.memory_space<vmem>>, %arg5: memref<1x256xf32, #tpu.memory_space<vmem>>, %arg6: memref<16x256xf32, #tpu.memory_space<vmem>>) attributes {dimension_semantics = [#tpu.dimension_semantics<parallel>, #tpu.dimension_semantics<parallel>, #tpu.dimension_semantics<arbitrary>], iteration_bounds = array<i64: 1, 1, 1>, scalar_prefetch = 0 : i64, scratch_operands = 0 : i64, tpu.core_type = #tpu.core_type<tc>, window_params = [{transform_indices = @transform_0, window_bounds = array<i64: 16, 128>}, {transform_indices = @transform_1, window_bounds = array<i64: 128, 256>}, {transform_indices = @transform_2, window_bounds = array<i64: 1, 256>}, {transform_indices = @transform_3, window_bounds = array<i64: 16, 256>}]} {
    %c0 = arith.constant 0 : index
    %c0_0 = arith.constant 0 : index
    %0 = vector.load %arg3[%c0, %c0_0] : memref<16x128xbf16, #tpu.memory_space<vmem>>, vector<16x128xbf16>
    %c0_1 = arith.constant 0 : index
    %c0_2 = arith.constant 0 : index
    %1 = vector.load %arg4[%c0_1, %c0_2] : memref<128x256xbf16, #tpu.memory_space<vmem>>, vector<128x256xbf16>
    %cst = arith.constant dense<0.000000e+00> : vector<16x256xf32>
    %2 = tpu.matmul %0, %1, %cst {dimension_numbers = #tpu.dot_dimension_numbers<[1], [0], [0], [1], [0, 0, 1, 1], [], []>} : vector<16x128xbf16>, vector<128x256xbf16>, vector<16x256xf32> -> vector<16x256xf32>
    %c0_3 = arith.constant 0 : index
    %c0_4 = arith.constant 0 : index
    %3 = vector.load %arg5[%c0_3, %c0_4] : memref<1x256xf32, #tpu.memory_space<vmem>>, vector<1x256xf32>
    %4 = vector.broadcast %3 : vector<1x256xf32> to vector<16x256xf32>
    %5 = arith.addf %2, %4 : vector<16x256xf32>
    %c0_5 = arith.constant 0 : index
    %c0_6 = arith.constant 0 : index
    %6 = vector.load %arg6[%c0_5, %c0_6] : memref<16x256xf32, #tpu.memory_space<vmem>>, vector<16x256xf32>
    tpu.vector_store %arg6[%c0_5, %c0_6], %5 {strides = array<i32>} : memref<16x256xf32, #tpu.memory_space<vmem>>, vector<16x256xf32>,
    return
  }
  func.func @transform_0(%arg0: i32, %arg1: i32, %arg2: i32) -> (i32, i32) {
    %c0_i32 = arith.constant 0 : i32
    return %arg0, %arg2 : i32, i32
  }
  func.func @transform_1(%arg0: i32, %arg1: i32, %arg2: i32) -> (i32, i32) {
    %c0_i32 = arith.constant 0 : i32
    return %arg2, %arg1 : i32, i32
  }
  func.func @transform_2(%arg0: i32, %arg1: i32, %arg2: i32) -> (i32, i32) {
    %c0_i32 = arith.constant 0 : i32
    %c0_i32_0 = arith.constant 0 : i32
    return %c0_i32, %arg1 : i32, i32
  }
  func.func @transform_3(%arg0: i32, %arg1: i32, %arg2: i32) -> (i32, i32) {
    %c0_i32 = arith.constant 0 : i32
    return %arg0, %arg1 : i32, i32
  }
}

module attributes {stable_mosaic.version = 11 : i64} {
  func.func @_mm_kernel_single(%arg0: i32, %arg1: i32, %arg2: i32, %arg3: memref<16x128xbf16, #tpu.memory_space<vmem>>, %arg4: memref<128x128xbf16, #tpu.memory_space<vmem>>, %arg5: memref<1x128xf32, #tpu.memory_space<vmem>>, %arg6: memref<16x128xbf16, #tpu.memory_space<vmem>>) attributes {dimension_semantics = [#tpu.dimension_semantics<parallel>, #tpu.dimension_semantics<parallel>, #tpu.dimension_semantics<arbitrary>], iteration_bounds = array<i64: 1, 1, 1>, scalar_prefetch = 0 : i64, scratch_operands = 0 : i64, tpu.core_type = #tpu.core_type<tc>, window_params = [{transform_indices = @transform_0, window_bounds = array<i64: 16, 128>}, {transform_indices = @transform_1, window_bounds = array<i64: 128, 128>}, {transform_indices = @transform_2, window_bounds = array<i64: 1, 128>}, {transform_indices = @transform_3, window_bounds = array<i64: 16, 128>}]} {
    %c0 = arith.constant 0 : index
    %c0_0 = arith.constant 0 : index
    %0 = vector.load %arg3[%c0, %c0_0] : memref<16x128xbf16, #tpu.memory_space<vmem>>, vector<16x128xbf16>
    %c0_1 = arith.constant 0 : index
    %c0_2 = arith.constant 0 : index
    %1 = vector.load %arg4[%c0_1, %c0_2] : memref<128x128xbf16, #tpu.memory_space<vmem>>, vector<128x128xbf16>
    %cst = arith.constant dense<0.000000e+00> : vector<16x128xf32>
    %2 = tpu.matmul %0, %1, %cst {dimension_numbers = #tpu.dot_dimension_numbers<[1], [0], [0], [1], [0, 0, 1, 1], [], []>} : vector<16x128xbf16>, vector<128x128xbf16>, vector<16x128xf32> -> vector<16x128xf32>
    %c0_3 = arith.constant 0 : index
    %c0_4 = arith.constant 0 : index
    %3 = vector.load %arg5[%c0_3, %c0_4] : memref<1x128xf32, #tpu.memory_space<vmem>>, vector<1x128xf32>
    %4 = vector.broadcast %3 : vector<1x128xf32> to vector<16x128xf32>
    %5 = arith.addf %2, %4 : vector<16x128xf32>
    %cst_5 = arith.constant 0.000000e+00 : f32
    %6 = vector.broadcast %cst_5 : f32 to vector<16x128xf32>
    %7 = arith.maximumf %5, %6 : vector<16x128xf32>
    %8 = arith.truncf %7 : vector<16x128xf32> to vector<16x128xbf16>
    %c0_6 = arith.constant 0 : index
    %c0_7 = arith.constant 0 : index
    %9 = vector.load %arg6[%c0_6, %c0_7] : memref<16x128xbf16, #tpu.memory_space<vmem>>, vector<16x128xbf16>
    tpu.vector_store %arg6[%c0_6, %c0_7], %8 {strides = array<i32>} : memref<16x128xbf16, #tpu.memory_space<vmem>>, vector<16x128xbf16>,
    return
  }
  func.func @transform_0(%arg0: i32, %arg1: i32, %arg2: i32) -> (i32, i32) {
    %c0_i32 = arith.constant 0 : i32
    return %arg0, %arg2 : i32, i32
  }
  func.func @transform_1(%arg0: i32, %arg1: i32, %arg2: i32) -> (i32, i32) {
    %c0_i32 = arith.constant 0 : i32
    return %arg2, %arg1 : i32, i32
  }
  func.func @transform_2(%arg0: i32, %arg1: i32, %arg2: i32) -> (i32, i32) {
    %c0_i32 = arith.constant 0 : i32
    %c0_i32_0 = arith.constant 0 : i32
    return %c0_i32, %arg1 : i32, i32
  }
  func.func @transform_3(%arg0: i32, %arg1: i32, %arg2: i32) -> (i32, i32) {
    %c0_i32 = arith.constant 0 : i32
    return %arg0, %arg1 : i32, i32
  }
}

</mosaic_0001>

<llo_original>
// kernel: coarse_mask_head_forward.5
$region0: #{coarse_mask_head_forward.5}
  #allocation0 [shape = 'u32[]', space=smem, size = 0x4, offset = 0x4, fixed_abs, tag = 'smem constant byte address 0x4 - core index']
  #allocation1 [shape = 'u32[144,128]{1,0:T(1,128)}', space=vmem, size = 0x12000, scoped, tag = 'internal scratch']
  %s0 = inlined_call_operand.vmem [shape: bf16[512,128], index: 0, kind: input, shape index: {}]
  %s1 = inlined_call_operand.vmem [shape: bf16[128,128], index: 1, kind: input, shape index: {}]
  %s2 = inlined_call_operand.vmem [shape: f32[1,128], index: 2, kind: input, shape index: {}]
  %s3 = inlined_call_operand.vmem [shape: bf16[512,128], index: 3, kind: output, shape index: {}]
  %s4 = sld [smem:[#allocation0]]
  $region22: #{coarse_mask_head_forward.5} parent=0
    _
  %s6 = ssub.s32 1, %s4
  %s7 = scalar_select 0, %s6, %s4
  // Predicated region
  $region2: #{coarse_mask_head_forward.5} parent=0 // pred_check
    _
  $region3: #{coarse_mask_head_forward.5} parent=0 // pred_check_branch
    %9 = sbr.rel (0) target = $region5
  $region4: #{coarse_mask_head_forward.5} parent=0 // pred_region
    _
  $region5: #{coarse_mask_head_forward.5} parent=0 // pred_fallthru
    _
  // Predicated region
  $region6: #{coarse_mask_head_forward.5} parent=0 // pred_check
    _
  $region7: #{coarse_mask_head_forward.5} parent=0 // pred_check_branch
    %11 = sbr.rel (0) target = $region9
  $region8: #{coarse_mask_head_forward.5} parent=0 // pred_region
    _
  $region9: #{coarse_mask_head_forward.5} parent=0 // pred_fallthru
    _
  // Predicated region
  $region10: #{coarse_mask_head_forward.5} parent=0 // pred_check
    _
  $region11: #{coarse_mask_head_forward.5} parent=0 // pred_check_branch
    %13 = sbr.rel (0) target = $region13
  $region12: #{coarse_mask_head_forward.5} parent=0 // pred_region
    _
  $region13: #{coarse_mask_head_forward.5} parent=0 // pred_fallthru
    _
  %v15 = vld [vmem:[%s0] sm:$0xf]
  %v16 = vld [vmem:[%s0 + $0x4] sm:$0xf]
  %v17 = vld [vmem:[%s0 + $0x8] sm:$0xf]
  %v18 = vld [vmem:[%s0 + $0xc] sm:$0xf]
  %v19 = vld [vmem:[%s0 + $0x10] sm:$0xf]
  %v20 = vld [vmem:[%s0 + $0x14] sm:$0xf]
  %v21 = vld [vmem:[%s0 + $0x18] sm:$0xf]
  %v22 = vld [vmem:[%s0 + $0x1c] sm:$0xf]
  %v23 = vld [vmem:[%s0 + $0x20] sm:$0xf]
  %v24 = vld [vmem:[%s0 + $0x24] sm:$0xf]
  %v25 = vld [vmem:[%s0 + $0x28] sm:$0xf]
  %v26 = vld [vmem:[%s0 + $0x2c] sm:$0xf]
  %v27 = vld [vmem:[%s0 + $0x30] sm:$0xf]
  %v28 = vld [vmem:[%s0 + $0x34] sm:$0xf]
  %v29 = vld [vmem:[%s0 + $0x38] sm:$0xf]
  %v30 = vld [vmem:[%s0 + $0x3c] sm:$0xf]
  %v31 = vld [vmem:[%s0 + $0x40] sm:$0xf]
  %v32 = vld [vmem:[%s0 + $0x44] sm:$0xf]
  %v33 = vld [vmem:[%s0 + $0x48] sm:$0xf]
  %v34 = vld [vmem:[%s0 + $0x4c] sm:$0xf]
  %v35 = vld [vmem:[%s0 + $0x50] sm:$0xf]
  %v36 = vld [vmem:[%s0 + $0x54] sm:$0xf]
  %v37 = vld [vmem:[%s0 + $0x58] sm:$0xf]
  %v38 = vld [vmem:[%s0 + $0x5c] sm:$0xf]
  %v39 = vld [vmem:[%s0 + $0x60] sm:$0xf]
  %v40 = vld [vmem:[%s0 + $0x64] sm:$0xf]
  %v41 = vld [vmem:[%s0 + $0x68] sm:$0xf]
  %v42 = vld [vmem:[%s0 + $0x6c] sm:$0xf]
  %v43 = vld [vmem:[%s0 + $0x70] sm:$0xf]
  %v44 = vld [vmem:[%s0 + $0x74] sm:$0xf]
  %v45 = vld [vmem:[%s0 + $0x78] sm:$0xf]
  %v46 = vld [vmem:[%s0 + $0x7c] sm:$0xf]
  %v47 = vld [vmem:[%s0 + $0x80] sm:$0xf]
  %v48 = vld [vmem:[%s0 + $0x84] sm:$0xf]
  %v49 = vld [vmem:[%s0 + $0x88] sm:$0xf]
  %v50 = vld [vmem:[%s0 + $0x8c] sm:$0xf]
  %v51 = vld [vmem:[%s0 + $0x90] sm:$0xf]
  %v52 = vld [vmem:[%s0 + $0x94] sm:$0xf]
  %v53 = vld [vmem:[%s0 + $0x98] sm:$0xf]
  %v54 = vld [vmem:[%s0 + $0x9c] sm:$0xf]
  %v55 = vld [vmem:[%s0 + $0xa0] sm:$0xf]
  %v56 = vld [vmem:[%s0 + $0xa4] sm:$0xf]
  %v57 = vld [vmem:[%s0 + $0xa8] sm:$0xf]
  %v58 = vld [vmem:[%s0 + $0xac] sm:$0xf]
  %v59 = vld [vmem:[%s0 + $0xb0] sm:$0xf]
  %v60 = vld [vmem:[%s0 + $0xb4] sm:$0xf]
  %v61 = vld [vmem:[%s0 + $0xb8] sm:$0xf]
  %v62 = vld [vmem:[%s0 + $0xbc] sm:$0xf]
  %v63 = vld [vmem:[%s0 + $0xc0] sm:$0xf]
  %v64 = vld [vmem:[%s0 + $0xc4] sm:$0xf]
  %v65 = vld [vmem:[%s0 + $0xc8] sm:$0xf]
  %v66 = vld [vmem:[%s0 + $0xcc] sm:$0xf]
  %v67 = vld [vmem:[%s0 + $0xd0] sm:$0xf]
  %v68 = vld [vmem:[%s0 + $0xd4] sm:$0xf]
  %v69 = vld [vmem:[%s0 + $0xd8] sm:$0xf]
  %v70 = vld [vmem:[%s0 + $0xdc] sm:$0xf]
  %v71 = vld [vmem:[%s0 + $0xe0] sm:$0xf]
  %v72 = vld [vmem:[%s0 + $0xe4] sm:$0xf]
  %v73 = vld [vmem:[%s0 + $0xe8] sm:$0xf]
  %v74 = vld [vmem:[%s0 + $0xec] sm:$0xf]
  %v75 = vld [vmem:[%s0 + $0xf0] sm:$0xf]
  %v76 = vld [vmem:[%s0 + $0xf4] sm:$0xf]
  %v77 = vld [vmem:[%s0 + $0xf8] sm:$0xf]
  %v78 = vld [vmem:[%s0 + $0xfc] sm:$0xf]
  %v79 = vld [vmem:[%s1] sm:$0xf]
  %v80 = vld [vmem:[%s1 + $0x4] sm:$0xf]
  %v81 = vld [vmem:[%s1 + $0x8] sm:$0xf]
  %v82 = vld [vmem:[%s1 + $0xc] sm:$0xf]
  %v83 = vld [vmem:[%s1 + $0x10] sm:$0xf]
  %v84 = vld [vmem:[%s1 + $0x14] sm:$0xf]
  %v85 = vld [vmem:[%s1 + $0x18] sm:$0xf]
  %v86 = vld [vmem:[%s1 + $0x1c] sm:$0xf]
  %v87 = vld [vmem:[%s1 + $0x20] sm:$0xf]
  %v88 = vld [vmem:[%s1 + $0x24] sm:$0xf]
  %v89 = vld [vmem:[%s1 + $0x28] sm:$0xf]
  %v90 = vld [vmem:[%s1 + $0x2c] sm:$0xf]
  %v91 = vld [vmem:[%s1 + $0x30] sm:$0xf]
  %v92 = vld [vmem:[%s1 + $0x34] sm:$0xf]
  %v93 = vld [vmem:[%s1 + $0x38] sm:$0xf]
  %v94 = vld [vmem:[%s1 + $0x3c] sm:$0xf]
  %v95 = vld [vmem:[%s2] sm:$0x1]
  %v97 = vlaneseq
  %v98 = vshrl.u32 %v97, 7
  %v99 = vsub.s32 0, %v98
  %v100 = vrot.slane %v95, %v99
  %v166 = vunpack.c.l.b16 %v15
  %v167 = vunpack.c.l.b16 %v16
  %v168 = vunpack.c.l.b16 %v17
  %v169 = vunpack.c.l.b16 %v18
  %v170 = vunpack.c.l.b16 %v19
  %v171 = vunpack.c.l.b16 %v20
  %v172 = vunpack.c.l.b16 %v21
  %v173 = vunpack.c.l.b16 %v22
  %v174 = vunpack.c.l.b16 %v23
  %v175 = vunpack.c.l.b16 %v24
  %v176 = vunpack.c.l.b16 %v25
  %v177 = vunpack.c.l.b16 %v26
  %v178 = vunpack.c.l.b16 %v27
  %v179 = vunpack.c.l.b16 %v28
  %v180 = vunpack.c.l.b16 %v29
  %v181 = vunpack.c.l.b16 %v30
  %v182 = vunpack.c.l.b16 %v31
  %v183 = vunpack.c.l.b16 %v32
  %v184 = vunpack.c.l.b16 %v33
  %v185 = vunpack.c.l.b16 %v34
  %v186 = vunpack.c.l.b16 %v35
  %v187 = vunpack.c.l.b16 %v36
  %v188 = vunpack.c.l.b16 %v37
  %v189 = vunpack.c.l.b16 %v38
  %v190 = vunpack.c.l.b16 %v39
  %v191 = vunpack.c.l.b16 %v40
  %v192 = vunpack.c.l.b16 %v41
  %v193 = vunpack.c.l.b16 %v42
  %v194 = vunpack.c.l.b16 %v43
  %v195 = vunpack.c.l.b16 %v44
  %v196 = vunpack.c.l.b16 %v45
  %v197 = vunpack.c.l.b16 %v46
  %v198 = vunpack.c.l.b16 %v47
  %v199 = vunpack.c.l.b16 %v48
  %v200 = vunpack.c.l.b16 %v49
  %v201 = vunpack.c.l.b16 %v50
  %v202 = vunpack.c.l.b16 %v51
  %v203 = vunpack.c.l.b16 %v52
  %v204 = vunpack.c.l.b16 %v53
  %v205 = vunpack.c.l.b16 %v54
  %v206 = vunpack.c.l.b16 %v55
  %v207 = vunpack.c.l.b16 %v56
  %v208 = vunpack.c.l.b16 %v57
  %v209 = vunpack.c.l.b16 %v58
  %v210 = vunpack.c.l.b16 %v59
  %v211 = vunpack.c.l.b16 %v60
  %v212 = vunpack.c.l.b16 %v61
  %v213 = vunpack.c.l.b16 %v62
  %v214 = vunpack.c.l.b16 %v63
  %v215 = vunpack.c.l.b16 %v64
  %v216 = vunpack.c.l.b16 %v65
  %v217 = vunpack.c.l.b16 %v66
  %v218 = vunpack.c.l.b16 %v67
  %v219 = vunpack.c.l.b16 %v68
  %v220 = vunpack.c.l.b16 %v69
  %v221 = vunpack.c.l.b16 %v70
  %v222 = vunpack.c.l.b16 %v71
  %v223 = vunpack.c.l.b16 %v72
  %v224 = vunpack.c.l.b16 %v73
  %v225 = vunpack.c.l.b16 %v74
  %v226 = vunpack.c.l.b16 %v75
  %v227 = vunpack.c.l.b16 %v76
  %v228 = vunpack.c.l.b16 %v77
  %v229 = vunpack.c.l.b16 %v78
  %v230 = vpack.c.b16 %v167, %v166
  %v231 = vpack.c.b16 %v169, %v168
  %v232 = vpack.c.b16 %v171, %v170
  %v233 = vpack.c.b16 %v173, %v172
  %v234 = vpack.c.b16 %v175, %v174
  %v235 = vpack.c.b16 %v177, %v176
  %v236 = vpack.c.b16 %v179, %v178
  %v237 = vpack.c.b16 %v181, %v180
  %v238 = vpack.c.b16 %v183, %v182
  %v239 = vpack.c.b16 %v185, %v184
  %v240 = vpack.c.b16 %v187, %v186
  %v241 = vpack.c.b16 %v189, %v188
  %v242 = vpack.c.b16 %v191, %v190
  %v243 = vpack.c.b16 %v193, %v192
  %v244 = vpack.c.b16 %v195, %v194
  %v245 = vpack.c.b16 %v197, %v196
  %v246 = vpack.c.b16 %v199, %v198
  %v247 = vpack.c.b16 %v201, %v200
  %v248 = vpack.c.b16 %v203, %v202
  %v249 = vpack.c.b16 %v205, %v204
  %v250 = vpack.c.b16 %v207, %v206
  %v251 = vpack.c.b16 %v209, %v208
  %v252 = vpack.c.b16 %v211, %v210
  %v253 = vpack.c.b16 %v213, %v212
  %v254 = vpack.c.b16 %v215, %v214
  %v255 = vpack.c.b16 %v217, %v216
  %v256 = vpack.c.b16 %v219, %v218
  %v257 = vpack.c.b16 %v221, %v220
  %v258 = vpack.c.b16 %v223, %v222
  %v259 = vpack.c.b16 %v225, %v224
  %v260 = vpack.c.b16 %v227, %v226
  %v261 = vpack.c.b16 %v229, %v228
  %v310 = vunpack.c.l.b16 %v79
  %v311 = vunpack.c.l.b16 %v80
  %v312 = vunpack.c.l.b16 %v81
  %v313 = vunpack.c.l.b16 %v82
  %v314 = vunpack.c.l.b16 %v83
  %v315 = vunpack.c.l.b16 %v84
  %v316 = vunpack.c.l.b16 %v85
  %v317 = vunpack.c.l.b16 %v86
  %v318 = vunpack.c.l.b16 %v87
  %v319 = vunpack.c.l.b16 %v88
  %v320 = vunpack.c.l.b16 %v89
  %v321 = vunpack.c.l.b16 %v90
  %v322 = vunpack.c.l.b16 %v91
  %v323 = vunpack.c.l.b16 %v92
  %v324 = vunpack.c.l.b16 %v93
  %v325 = vunpack.c.l.b16 %v94
  %v326 = vpack.c.b16 %v311, %v310
  %v327 = vpack.c.b16 %v313, %v312
  %v328 = vpack.c.b16 %v315, %v314
  %v329 = vpack.c.b16 %v317, %v316
  %v330 = vpack.c.b16 %v319, %v318
  %v331 = vpack.c.b16 %v321, %v320
  %v332 = vpack.c.b16 %v323, %v322
  %v333 = vpack.c.b16 %v325, %v324
  %342 = vmatprep.subr.bf16.mxu0 0
  %343 = vmatpush1.bf16.msra.mxu0 %v326
  %344 = vmatprep.subr.bf16.mxu0 0
  %345 = vmatpush1.bf16.msra.mxu0 %v327
  %346 = vmatprep.subr.bf16.mxu0 0
  %347 = vmatpush1.bf16.msra.mxu0 %v328
  %348 = vmatprep.subr.bf16.mxu0 0
  %349 = vmatpush1.bf16.msra.mxu0 %v329
  %350 = vmatprep.subr.bf16.mxu0 0
  %351 = vmatpush1.bf16.msra.mxu0 %v330
  %352 = vmatprep.subr.bf16.mxu0 0
  %353 = vmatpush1.bf16.msra.mxu0 %v331
  %354 = vmatprep.subr.bf16.mxu0 0
  %355 = vmatpush1.bf16.msra.mxu0 %v332
  %356 = vmatprep.subr.bf16.mxu0 0
  %357 = vmatpush1.bf16.msra.mxu0 %v333
  %358 = vmatprep.subr.bf16.mxu0 0
  %359 = vmatpush1.bf16.msra.mxu0 0
  %360 = vmatprep.subr.bf16.mxu0 0
  %361 = vmatpush1.bf16.msra.mxu0 0
  %362 = vmatprep.subr.bf16.mxu0 0
  %363 = vmatpush1.bf16.msra.mxu0 0
  %364 = vmatprep.subr.bf16.mxu0 0
  %365 = vmatpush1.bf16.msra.mxu0 0
  %366 = vmatprep.subr.bf16.mxu0 0
  %367 = vmatpush1.bf16.msra.mxu0 0
  %368 = vmatprep.subr.bf16.mxu0 0
  %369 = vmatpush1.bf16.msra.mxu0 0
  %370 = vmatprep.subr.bf16.mxu0 0
  %371 = vmatpush1.bf16.msra.mxu0 0
  %372 = vmatprep.subr.bf16.mxu0 0
  %373 = vmatpush1.bf16.msra.mxu0 0
  %374 = vmatprep.mubr.bf16.mxu0 0
  %375 = vmatmul.mubr.bf16.gmra.mrb[0].mxu0 %v230
  %v376 = vpop.f32.mrb[0].mxu0
  %v377 = vadd.f32 %v100, %v376
  %v378 = vpop.f32.mrb[0].mxu0
  %v379 = vpop.f32.mrb[0].mxu0
  %v380 = vadd.f32 %v100, %v379
  %v381 = vpop.f32.mrb[0].mxu0
  %382 = vmatprep.mubr.bf16.mxu0 0
  %383 = vmatmul.mubr.bf16.gmra.mrb[0].mxu0 %v231
  %v384 = vpop.f32.mrb[0].mxu0
  %v385 = vadd.f32 %v100, %v384
  %v386 = vpop.f32.mrb[0].mxu0
  %v387 = vpop.f32.mrb[0].mxu0
  %v388 = vadd.f32 %v100, %v387
  %v389 = vpop.f32.mrb[0].mxu0
  %390 = vmatprep.mubr.bf16.mxu0 0
  %391 = vmatmul.mubr.bf16.gmra.mrb[0].mxu0 %v232
  %v392 = vpop.f32.mrb[0].mxu0
  %v393 = vadd.f32 %v100, %v392
  %v394 = vpop.f32.mrb[0].mxu0
  %v395 = vpop.f32.mrb[0].mxu0
  %v396 = vadd.f32 %v100, %v395
  %v397 = vpop.f32.mrb[0].mxu0
  %398 = vmatprep.mubr.bf16.mxu0 0
  %399 = vmatmul.mubr.bf16.gmra.mrb[0].mxu0 %v233
  %v400 = vpop.f32.mrb[0].mxu0
  %v401 = vadd.f32 %v100, %v400
  %v402 = vpop.f32.mrb[0].mxu0
  %v403 = vpop.f32.mrb[0].mxu0
  %v404 = vadd.f32 %v100, %v403
  %v405 = vpop.f32.mrb[0].mxu0
  %406 = vmatprep.mubr.bf16.mxu0 0
  %407 = vmatmul.mubr.bf16.gmra.mrb[0].mxu0 %v234
  %v408 = vpop.f32.mrb[0].mxu0
  %v409 = vadd.f32 %v100, %v408
  %v410 = vpop.f32.mrb[0].mxu0
  %v411 = vpop.f32.mrb[0].mxu0
  %v412 = vadd.f32 %v100, %v411
  %v413 = vpop.f32.mrb[0].mxu0
  %414 = vmatprep.mubr.bf16.mxu0 0
  %415 = vmatmul.mubr.bf16.gmra.mrb[0].mxu0 %v235
  %v416 = vpop.f32.mrb[0].mxu0
  %v417 = vadd.f32 %v100, %v416
  %v418 = vpop.f32.mrb[0].mxu0
  %v419 = vpop.f32.mrb[0].mxu0
  %v420 = vadd.f32 %v100, %v419
  %v421 = vpop.f32.mrb[0].mxu0
  %422 = vmatprep.mubr.bf16.mxu0 0
  %423 = vmatmul.mubr.bf16.gmra.mrb[0].mxu0 %v236
  %v424 = vpop.f32.mrb[0].mxu0
  %v425 = vadd.f32 %v100, %v424
  %v426 = vpop.f32.mrb[0].mxu0
  %v427 = vpop.f32.mrb[0].mxu0
  %v428 = vadd.f32 %v100, %v427
  %v429 = vpop.f32.mrb[0].mxu0
  %430 = vmatprep.mubr.bf16.mxu0 0
  %431 = vmatmul.mubr.bf16.gmra.mrb[0].mxu0 %v237
  %v432 = vpop.f32.mrb[0].mxu0
  %v433 = vadd.f32 %v100, %v432
  %v434 = vpop.f32.mrb[0].mxu0
  %v435 = vpop.f32.mrb[0].mxu0
  %v436 = vadd.f32 %v100, %v435
  %v437 = vpop.f32.mrb[0].mxu0
  %438 = vmatprep.mubr.bf16.mxu0 0
  %439 = vmatmul.mubr.bf16.gmra.mrb[0].mxu0 %v238
  %v440 = vpop.f32.mrb[0].mxu0
  %v441 = vadd.f32 %v100, %v440
  %v442 = vpop.f32.mrb[0].mxu0
  %v443 = vpop.f32.mrb[0].mxu0
  %v444 = vadd.f32 %v100, %v443
  %v445 = vpop.f32.mrb[0].mxu0
  %446 = vmatprep.mubr.bf16.mxu0 0
  %447 = vmatmul.mubr.bf16.gmra.mrb[0].mxu0 %v239
  %v448 = vpop.f32.mrb[0].mxu0
  %v449 = vadd.f32 %v100, %v448
  %v450 = vpop.f32.mrb[0].mxu0
  %v451 = vpop.f32.mrb[0].mxu0
  %v452 = vadd.f32 %v100, %v451
  %v453 = vpop.f32.mrb[0].mxu0
  %454 = vmatprep.mubr.bf16.mxu0 0
  %455 = vmatmul.mubr.bf16.gmra.mrb[0].mxu0 %v240
  %v456 = vpop.f32.mrb[0].mxu0
  %v457 = vadd.f32 %v100, %v456
  %v458 = vpop.f32.mrb[0].mxu0
  %v459 = vpop.f32.mrb[0].mxu0
  %v460 = vadd.f32 %v100, %v459
  %v461 = vpop.f32.mrb[0].mxu0
  %462 = vmatprep.mubr.bf16.mxu0 0
  %463 = vmatmul.mubr.bf16.gmra.mrb[0].mxu0 %v241
  %v464 = vpop.f32.mrb[0].mxu0
  %v465 = vadd.f32 %v100, %v464
  %v466 = vpop.f32.mrb[0].mxu0
  %v467 = vpop.f32.mrb[0].mxu0
  %v468 = vadd.f32 %v100, %v467
  %v469 = vpop.f32.mrb[0].mxu0
  %470 = vmatprep.mubr.bf16.mxu0 0
  %471 = vmatmul.mubr.bf16.gmra.mrb[0].mxu0 %v242
  %v472 = vpop.f32.mrb[0].mxu0
  %v473 = vadd.f32 %v100, %v472
  %v474 = vpop.f32.mrb[0].mxu0
  %v475 = vpop.f32.mrb[0].mxu0
  %v476 = vadd.f32 %v100, %v475
  %v477 = vpop.f32.mrb[0].mxu0
  %478 = vmatprep.mubr.bf16.mxu0 0
  %479 = vmatmul.mubr.bf16.gmra.mrb[0].mxu0 %v243
  %v480 = vpop.f32.mrb[0].mxu0
  %v481 = vadd.f32 %v100, %v480
  %v482 = vpop.f32.mrb[0].mxu0
  %v483 = vpop.f32.mrb[0].mxu0
  %v484 = vadd.f32 %v100, %v483
  %v485 = vpop.f32.mrb[0].mxu0
  %486 = vmatprep.mubr.bf16.mxu0 0
  %487 = vmatmul.mubr.bf16.gmra.mrb[0].mxu0 %v244
  %v488 = vpop.f32.mrb[0].mxu0
  %v489 = vadd.f32 %v100, %v488
  %v490 = vpop.f32.mrb[0].mxu0
  %v491 = vpop.f32.mrb[0].mxu0
  %v492 = vadd.f32 %v100, %v491
  %v493 = vpop.f32.mrb[0].mxu0
  %494 = vmatprep.mubr.bf16.mxu0 0
  %495 = vmatmul.mubr.bf16.gmra.mrb[0].mxu0 %v245
  %v496 = vpop.f32.mrb[0].mxu0
  %v497 = vadd.f32 %v100, %v496
  %v498 = vpop.f32.mrb[0].mxu0
  %v499 = vpop.f32.mrb[0].mxu0
  %v500 = vadd.f32 %v100, %v499
  %v501 = vpop.f32.mrb[0].mxu0
  %502 = vmatprep.mubr.bf16.mxu0 0
  %503 = vmatmul.mubr.bf16.gmra.mrb[0].mxu0 %v246
  %v504 = vpop.f32.mrb[0].mxu0
  %v505 = vadd.f32 %v100, %v504
  %v506 = vpop.f32.mrb[0].mxu0
  %v507 = vpop.f32.mrb[0].mxu0
  %v508 = vadd.f32 %v100, %v507
  %v509 = vpop.f32.mrb[0].mxu0
  %510 = vmatprep.mubr.bf16.mxu0 0
  %511 = vmatmul.mubr.bf16.gmra.mrb[0].mxu0 %v247
  %v512 = vpop.f32.mrb[0].mxu0
  %v513 = vadd.f32 %v100, %v512
  %v514 = vpop.f32.mrb[0].mxu0
  %v515 = vpop.f32.mrb[0].mxu0
  %v516 = vadd.f32 %v100, %v515
  %v517 = vpop.f32.mrb[0].mxu0
  %518 = vmatprep.mubr.bf16.mxu0 0
  %519 = vmatmul.mubr.bf16.gmra.mrb[0].mxu0 %v248
  %v520 = vpop.f32.mrb[0].mxu0
  %v521 = vadd.f32 %v100, %v520
  %v522 = vpop.f32.mrb[0].mxu0
  %v523 = vpop.f32.mrb[0].mxu0
  %v524 = vadd.f32 %v100, %v523
  %v525 = vpop.f32.mrb[0].mxu0
  %526 = vmatprep.mubr.bf16.mxu0 0
  %527 = vmatmul.mubr.bf16.gmra.mrb[0].mxu0 %v249
  %v528 = vpop.f32.mrb[0].mxu0
  %v529 = vadd.f32 %v100, %v528
  %v530 = vpop.f32.mrb[0].mxu0
  %v531 = vpop.f32.mrb[0].mxu0
  %v532 = vadd.f32 %v100, %v531
  %v533 = vpop.f32.mrb[0].mxu0
  %534 = vmatprep.mubr.bf16.mxu0 0
  %535 = vmatmul.mubr.bf16.gmra.mrb[0].mxu0 %v250
  %v536 = vpop.f32.mrb[0].mxu0
  %v537 = vadd.f32 %v100, %v536
  %v538 = vpop.f32.mrb[0].mxu0
  %v539 = vpop.f32.mrb[0].mxu0
  %v540 = vadd.f32 %v100, %v539
  %v541 = vpop.f32.mrb[0].mxu0
  %542 = vmatprep.mubr.bf16.mxu0 0
  %543 = vmatmul.mubr.bf16.gmra.mrb[0].mxu0 %v251
  %v544 = vpop.f32.mrb[0].mxu0
  %v545 = vadd.f32 %v100, %v544
  %v546 = vpop.f32.mrb[0].mxu0
  %v547 = vpop.f32.mrb[0].mxu0
  %v548 = vadd.f32 %v100, %v547
  %v549 = vpop.f32.mrb[0].mxu0
  %550 = vmatprep.mubr.bf16.mxu0 0
  %551 = vmatmul.mubr.bf16.gmra.mrb[0].mxu0 %v252
  %v552 = vpop.f32.mrb[0].mxu0
  %v553 = vadd.f32 %v100, %v552
  %v554 = vpop.f32.mrb[0].mxu0
  %v555 = vpop.f32.mrb[0].mxu0
  %v556 = vadd.f32 %v100, %v555
  %v557 = vpop.f32.mrb[0].mxu0
  %558 = vmatprep.mubr.bf16.mxu0 0
  %559 = vmatmul.mubr.bf16.gmra.mrb[0].mxu0 %v253
  %v560 = vpop.f32.mrb[0].mxu0
  %v561 = vadd.f32 %v100, %v560
  %v562 = vpop.f32.mrb[0].mxu0
  %v563 = vpop.f32.mrb[0].mxu0
  %v564 = vadd.f32 %v100, %v563
  %v565 = vpop.f32.mrb[0].mxu0
  %566 = vmatprep.mubr.bf16.mxu0 0
  %567 = vmatmul.mubr.bf16.gmra.mrb[0].mxu0 %v254
  %v568 = vpop.f32.mrb[0].mxu0
  %v569 = vadd.f32 %v100, %v568
  %v570 = vpop.f32.mrb[0].mxu0
  %v571 = vpop.f32.mrb[0].mxu0
  %v572 = vadd.f32 %v100, %v571
  %v573 = vpop.f32.mrb[0].mxu0
  %574 = vmatprep.mubr.bf16.mxu0 0
  %575 = vmatmul.mubr.bf16.gmra.mrb[0].mxu0 %v255
  %v576 = vpop.f32.mrb[0].mxu0
  %v577 = vadd.f32 %v100, %v576
  %v578 = vpop.f32.mrb[0].mxu0
  %v579 = vpop.f32.mrb[0].mxu0
  %v580 = vadd.f32 %v100, %v579
  %v581 = vpop.f32.mrb[0].mxu0
  %582 = vmatprep.mubr.bf16.mxu0 0
  %583 = vmatmul.mubr.bf16.gmra.mrb[0].mxu0 %v256
  %v584 = vpop.f32.mrb[0].mxu0
  %v585 = vadd.f32 %v100, %v584
  %v586 = vpop.f32.mrb[0].mxu0
  %v587 = vpop.f32.mrb[0].mxu0
  %v588 = vadd.f32 %v100, %v587
  %v589 = vpop.f32.mrb[0].mxu0
  %590 = vmatprep.mubr.bf16.mxu0 0
  %591 = vmatmul.mubr.bf16.gmra.mrb[0].mxu0 %v257
  %v592 = vpop.f32.mrb[0].mxu0
  %v593 = vadd.f32 %v100, %v592
  %v594 = vpop.f32.mrb[0].mxu0
  %v595 = vpop.f32.mrb[0].mxu0
  %v596 = vadd.f32 %v100, %v595
  %v597 = vpop.f32.mrb[0].mxu0
  %598 = vmatprep.mubr.bf16.mxu0 0
  %599 = vmatmul.mubr.bf16.gmra.mrb[0].mxu0 %v258
  %v600 = vpop.f32.mrb[0].mxu0
  %v601 = vadd.f32 %v100, %v600
  %v602 = vpop.f32.mrb[0].mxu0
  %v603 = vpop.f32.mrb[0].mxu0
  %v604 = vadd.f32 %v100, %v603
  %v605 = vpop.f32.mrb[0].mxu0
  %606 = vmatprep.mubr.bf16.mxu0 0
  %607 = vmatmul.mubr.bf16.gmra.mrb[0].mxu0 %v259
  %v608 = vpop.f32.mrb[0].mxu0
  %v609 = vadd.f32 %v100, %v608
  %v610 = vpop.f32.mrb[0].mxu0
  %v611 = vpop.f32.mrb[0].mxu0
  %v612 = vadd.f32 %v100, %v611
  %v613 = vpop.f32.mrb[0].mxu0
  %614 = vmatprep.mubr.bf16.mxu0 0
  %615 = vmatmul.mubr.bf16.gmra.mrb[0].mxu0 %v260
  %v616 = vpop.f32.mrb[0].mxu0
  %v617 = vadd.f32 %v100, %v616
  %v618 = vpop.f32.mrb[0].mxu0
  %v619 = vpop.f32.mrb[0].mxu0
  %v620 = vadd.f32 %v100, %v619
  %v621 = vpop.f32.mrb[0].mxu0
  %622 = vmatprep.mubr.bf16.mxu0 0
  %623 = vmatmul.mubr.bf16.gmra.mrb[0].mxu0 %v261
  %v624 = vpop.f32.mrb[0].mxu0
  %v625 = vadd.f32 %v100, %v624
  %v626 = vpop.f32.mrb[0].mxu0
  %v627 = vpop.f32.mrb[0].mxu0
  %v628 = vadd.f32 %v100, %v627
  %v629 = vpop.f32.mrb[0].mxu0
  %630 = vdwg.mxu0
  %v631 = vmax.f32 %v377, 0.0
  %v632 = vmax.f32 %v380, 0.0
  %v633 = vmax.f32 %v385, 0.0
  %v634 = vmax.f32 %v388, 0.0
  %v635 = vmax.f32 %v393, 0.0
  %v636 = vmax.f32 %v396, 0.0
  %v637 = vmax.f32 %v401, 0.0
  %v638 = vmax.f32 %v404, 0.0
  %v639 = vmax.f32 %v409, 0.0
  %v640 = vmax.f32 %v412, 0.0
  %v641 = vmax.f32 %v417, 0.0
  %v642 = vmax.f32 %v420, 0.0
  %v643 = vmax.f32 %v425, 0.0
  %v644 = vmax.f32 %v428, 0.0
  %v645 = vmax.f32 %v433, 0.0
  %v646 = vmax.f32 %v436, 0.0
  %v647 = vmax.f32 %v441, 0.0
  %v648 = vmax.f32 %v444, 0.0
  %v649 = vmax.f32 %v449, 0.0
  %v650 = vmax.f32 %v452, 0.0
  %v651 = vmax.f32 %v457, 0.0
  %v652 = vmax.f32 %v460, 0.0
  %v653 = vmax.f32 %v465, 0.0
  %v654 = vmax.f32 %v468, 0.0
  %v655 = vmax.f32 %v473, 0.0
  %v656 = vmax.f32 %v476, 0.0
  %v657 = vmax.f32 %v481, 0.0
  %v658 = vmax.f32 %v484, 0.0
  %v659 = vmax.f32 %v489, 0.0
  %v660 = vmax.f32 %v492, 0.0
  %v661 = vmax.f32 %v497, 0.0
  %v662 = vmax.f32 %v500, 0.0
  %v663 = vmax.f32 %v505, 0.0
  %v664 = vmax.f32 %v508, 0.0
  %v665 = vmax.f32 %v513, 0.0
  %v666 = vmax.f32 %v516, 0.0
  %v667 = vmax.f32 %v521, 0.0
  %v668 = vmax.f32 %v524, 0.0
  %v669 = vmax.f32 %v529, 0.0
  %v670 = vmax.f32 %v532, 0.0
  %v671 = vmax.f32 %v537, 0.0
  %v672 = vmax.f32 %v540, 0.0
  %v673 = vmax.f32 %v545, 0.0
  %v674 = vmax.f32 %v548, 0.0
  %v675 = vmax.f32 %v553, 0.0
  %v676 = vmax.f32 %v556, 0.0
  %v677 = vmax.f32 %v561, 0.0
  %v678 = vmax.f32 %v564, 0.0
  %v679 = vmax.f32 %v569, 0.0
  %v680 = vmax.f32 %v572, 0.0
  %v681 = vmax.f32 %v577, 0.0
  %v682 = vmax.f32 %v580, 0.0
  %v683 = vmax.f32 %v585, 0.0
  %v684 = vmax.f32 %v588, 0.0
  %v685 = vmax.f32 %v593, 0.0
  %v686 = vmax.f32 %v596, 0.0
  %v687 = vmax.f32 %v601, 0.0
  %v688 = vmax.f32 %v604, 0.0
  %v689 = vmax.f32 %v609, 0.0
  %v690 = vmax.f32 %v612, 0.0
  %v691 = vmax.f32 %v617, 0.0
  %v692 = vmax.f32 %v620, 0.0
  %v693 = vmax.f32 %v625, 0.0
  %v694 = vmax.f32 %v628, 0.0
  %v695 = vpack.c.bf16 %v632, %v631
  %v696 = vpack.c.bf16 %v634, %v633
  %v697 = vpack.c.bf16 %v636, %v635
  %v698 = vpack.c.bf16 %v638, %v637
  %v699 = vpack.c.bf16 %v640, %v639
  %v700 = vpack.c.bf16 %v642, %v641
  %v701 = vpack.c.bf16 %v644, %v643
  %v702 = vpack.c.bf16 %v646, %v645
  %v703 = vpack.c.bf16 %v648, %v647
  %v704 = vpack.c.bf16 %v650, %v649
  %v705 = vpack.c.bf16 %v652, %v651
  %v706 = vpack.c.bf16 %v654, %v653
  %v707 = vpack.c.bf16 %v656, %v655
  %v708 = vpack.c.bf16 %v658, %v657
  %v709 = vpack.c.bf16 %v660, %v659
  %v710 = vpack.c.bf16 %v662, %v661
  %v711 = vpack.c.bf16 %v664, %v663
  %v712 = vpack.c.bf16 %v666, %v665
  %v713 = vpack.c.bf16 %v668, %v667
  %v714 = vpack.c.bf16 %v670, %v669
  %v715 = vpack.c.bf16 %v672, %v671
  %v716 = vpack.c.bf16 %v674, %v673
  %v717 = vpack.c.bf16 %v676, %v675
  %v718 = vpack.c.bf16 %v678, %v677
  %v719 = vpack.c.bf16 %v680, %v679
  %v720 = vpack.c.bf16 %v682, %v681
  %v721 = vpack.c.bf16 %v684, %v683
  %v722 = vpack.c.bf16 %v686, %v685
  %v723 = vpack.c.bf16 %v688, %v687
  %v724 = vpack.c.bf16 %v690, %v689
  %v725 = vpack.c.bf16 %v692, %v691
  %v726 = vpack.c.bf16 %v694, %v693
  %v759 = vunpack.c.l.b16 %v695
  %v760 = vunpack.c.h.b16 %v695
  %v761 = vunpack.c.l.b16 %v696
  %v762 = vunpack.c.h.b16 %v696
  %v763 = vunpack.c.l.b16 %v697
  %v764 = vunpack.c.h.b16 %v697
  %v765 = vunpack.c.l.b16 %v698
  %v766 = vunpack.c.h.b16 %v698
  %v767 = vunpack.c.l.b16 %v699
  %v768 = vunpack.c.h.b16 %v699
  %v769 = vunpack.c.l.b16 %v700
  %v770 = vunpack.c.h.b16 %v700
  %v771 = vunpack.c.l.b16 %v701
  %v772 = vunpack.c.h.b16 %v701
  %v773 = vunpack.c.l.b16 %v702
  %v774 = vunpack.c.h.b16 %v702
  %v775 = vunpack.c.l.b16 %v703
  %v776 = vunpack.c.h.b16 %v703
  %v777 = vunpack.c.l.b16 %v704
  %v778 = vunpack.c.h.b16 %v704
  %v779 = vunpack.c.l.b16 %v705
  %v780 = vunpack.c.h.b16 %v705
  %v781 = vunpack.c.l.b16 %v706
  %v782 = vunpack.c.h.b16 %v706
  %v783 = vunpack.c.l.b16 %v707
  %v784 = vunpack.c.h.b16 %v707
  %v785 = vunpack.c.l.b16 %v708
  %v786 = vunpack.c.h.b16 %v708
  %v787 = vunpack.c.l.b16 %v709
  %v788 = vunpack.c.h.b16 %v709
  %v789 = vunpack.c.l.b16 %v710
  %v790 = vunpack.c.h.b16 %v710
  %v791 = vunpack.c.l.b16 %v711
  %v792 = vunpack.c.h.b16 %v711
  %v793 = vunpack.c.l.b16 %v712
  %v794 = vunpack.c.h.b16 %v712
  %v795 = vunpack.c.l.b16 %v713
  %v796 = vunpack.c.h.b16 %v713
  %v797 = vunpack.c.l.b16 %v714
  %v798 = vunpack.c.h.b16 %v714
  %v799 = vunpack.c.l.b16 %v715
  %v800 = vunpack.c.h.b16 %v715
  %v801 = vunpack.c.l.b16 %v716
  %v802 = vunpack.c.h.b16 %v716
  %v803 = vunpack.c.l.b16 %v717
  %v804 = vunpack.c.h.b16 %v717
  %v805 = vunpack.c.l.b16 %v718
  %v806 = vunpack.c.h.b16 %v718
  %v807 = vunpack.c.l.b16 %v719
  %v808 = vunpack.c.h.b16 %v719
  %v809 = vunpack.c.l.b16 %v720
  %v810 = vunpack.c.h.b16 %v720
  %v811 = vunpack.c.l.b16 %v721
  %v812 = vunpack.c.h.b16 %v721
  %v813 = vunpack.c.l.b16 %v722
  %v814 = vunpack.c.h.b16 %v722
  %v815 = vunpack.c.l.b16 %v723
  %v816 = vunpack.c.h.b16 %v723
  %v817 = vunpack.c.l.b16 %v724
  %v818 = vunpack.c.h.b16 %v724
  %v819 = vunpack.c.l.b16 %v725
  %v820 = vunpack.c.h.b16 %v725
  %v821 = vunpack.c.l.b16 %v726
  %v822 = vunpack.c.h.b16 %v726
  %v823 = vpack.c.b16 %v759, %v759
  %v824 = vpack.c.b16 %v760, %v760
  %v825 = vpack.c.b16 %v761, %v761
  %v826 = vpack.c.b16 %v762, %v762
  %v827 = vpack.c.b16 %v763, %v763
  %v828 = vpack.c.b16 %v764, %v764
  %v829 = vpack.c.b16 %v765, %v765
  %v830 = vpack.c.b16 %v766, %v766
  %v831 = vpack.c.b16 %v767, %v767
  %v832 = vpack.c.b16 %v768, %v768
  %v833 = vpack.c.b16 %v769, %v769
  %v834 = vpack.c.b16 %v770, %v770
  %v835 = vpack.c.b16 %v771, %v771
  %v836 = vpack.c.b16 %v772, %v772
  %v837 = vpack.c.b16 %v773, %v773
  %v838 = vpack.c.b16 %v774, %v774
  %v839 = vpack.c.b16 %v775, %v775
  %v840 = vpack.c.b16 %v776, %v776
  %v841 = vpack.c.b16 %v777, %v777
  %v842 = vpack.c.b16 %v778, %v778
  %v843 = vpack.c.b16 %v779, %v779
  %v844 = vpack.c.b16 %v780, %v780
  %v845 = vpack.c.b16 %v781, %v781
  %v846 = vpack.c.b16 %v782, %v782
  %v847 = vpack.c.b16 %v783, %v783
  %v848 = vpack.c.b16 %v784, %v784
  %v849 = vpack.c.b16 %v785, %v785
  %v850 = vpack.c.b16 %v786, %v786
  %v851 = vpack.c.b16 %v787, %v787
  %v852 = vpack.c.b16 %v788, %v788
  %v853 = vpack.c.b16 %v789, %v789
  %v854 = vpack.c.b16 %v790, %v790
  %v855 = vpack.c.b16 %v791, %v791
  %v856 = vpack.c.b16 %v792, %v792
  %v857 = vpack.c.b16 %v793, %v793
  %v858 = vpack.c.b16 %v794, %v794
  %v859 = vpack.c.b16 %v795, %v795
  %v860 = vpack.c.b16 %v796, %v796
  %v861 = vpack.c.b16 %v797, %v797
  %v862 = vpack.c.b16 %v798, %v798
  %v863 = vpack.c.b16 %v799, %v799
  %v864 = vpack.c.b16 %v800, %v800
  %v865 = vpack.c.b16 %v801, %v801
  %v866 = vpack.c.b16 %v802, %v802
  %v867 = vpack.c.b16 %v803, %v803
  %v868 = vpack.c.b16 %v804, %v804
  %v869 = vpack.c.b16 %v805, %v805
  %v870 = vpack.c.b16 %v806, %v806
  %v871 = vpack.c.b16 %v807, %v807
  %v872 = vpack.c.b16 %v808, %v808
  %v873 = vpack.c.b16 %v809, %v809
  %v874 = vpack.c.b16 %v810, %v810
  %v875 = vpack.c.b16 %v811, %v811
  %v876 = vpack.c.b16 %v812, %v812
  %v877 = vpack.c.b16 %v813, %v813
  %v878 = vpack.c.b16 %v814, %v814
  %v879 = vpack.c.b16 %v815, %v815
  %v880 = vpack.c.b16 %v816, %v816
  %v881 = vpack.c.b16 %v817, %v817
  %v882 = vpack.c.b16 %v818, %v818
  %v883 = vpack.c.b16 %v819, %v819
  %v884 = vpack.c.b16 %v820, %v820
  %v885 = vpack.c.b16 %v821, %v821
  %v886 = vpack.c.b16 %v822, %v822
  %951 = vst [vmem:[%s3] sm:$0xf] %v823
  %952 = vst [vmem:[%s3 + $0x4] sm:$0xf] %v824
  %953 = vst [vmem:[%s3 + $0x8] sm:$0xf] %v825
  %954 = vst [vmem:[%s3 + $0xc] sm:$0xf] %v826
  %955 = vst [vmem:[%s3 + $0x10] sm:$0xf] %v827
  %956 = vst [vmem:[%s3 + $0x14] sm:$0xf] %v828
  %957 = vst [vmem:[%s3 + $0x18] sm:$0xf] %v829
  %958 = vst [vmem:[%s3 + $0x1c] sm:$0xf] %v830
  %959 = vst [vmem:[%s3 + $0x20] sm:$0xf] %v831
  %960 = vst [vmem:[%s3 + $0x24] sm:$0xf] %v832
  %961 = vst [vmem:[%s3 + $0x28] sm:$0xf] %v833
  %962 = vst [vmem:[%s3 + $0x2c] sm:$0xf] %v834
  %963 = vst [vmem:[%s3 + $0x30] sm:$0xf] %v835
  %964 = vst [vmem:[%s3 + $0x34] sm:$0xf] %v836
  %965 = vst [vmem:[%s3 + $0x38] sm:$0xf] %v837
  %966 = vst [vmem:[%s3 + $0x3c] sm:$0xf] %v838
  %967 = vst [vmem:[%s3 + $0x40] sm:$0xf] %v839
  %968 = vst [vmem:[%s3 + $0x44] sm:$0xf] %v840
  %969 = vst [vmem:[%s3 + $0x48] sm:$0xf] %v841
  %970 = vst [vmem:[%s3 + $0x4c] sm:$0xf] %v842
  %971 = vst [vmem:[%s3 + $0x50] sm:$0xf] %v843
  %972 = vst [vmem:[%s3 + $0x54] sm:$0xf] %v844
  %973 = vst [vmem:[%s3 + $0x58] sm:$0xf] %v845
  %974 = vst [vmem:[%s3 + $0x5c] sm:$0xf] %v846
  %975 = vst [vmem:[%s3 + $0x60] sm:$0xf] %v847
  %976 = vst [vmem:[%s3 + $0x64] sm:$0xf] %v848
  %977 = vst [vmem:[%s3 + $0x68] sm:$0xf] %v849
  %978 = vst [vmem:[%s3 + $0x6c] sm:$0xf] %v850
  %979 = vst [vmem:[%s3 + $0x70] sm:$0xf] %v851
  %980 = vst [vmem:[%s3 + $0x74] sm:$0xf] %v852
  %981 = vst [vmem:[%s3 + $0x78] sm:$0xf] %v853
  %982 = vst [vmem:[%s3 + $0x7c] sm:$0xf] %v854
  %983 = vst [vmem:[%s3 + $0x80] sm:$0xf] %v855
  %984 = vst [vmem:[%s3 + $0x84] sm:$0xf] %v856
  %985 = vst [vmem:[%s3 + $0x88] sm:$0xf] %v857
  %986 = vst [vmem:[%s3 + $0x8c] sm:$0xf] %v858
  %987 = vst [vmem:[%s3 + $0x90] sm:$0xf] %v859
  %988 = vst [vmem:[%s3 + $0x94] sm:$0xf] %v860
  %989 = vst [vmem:[%s3 + $0x98] sm:$0xf] %v861
  %990 = vst [vmem:[%s3 + $0x9c] sm:$0xf] %v862
  %991 = vst [vmem:[%s3 + $0xa0] sm:$0xf] %v863
  %992 = vst [vmem:[%s3 + $0xa4] sm:$0xf] %v864
  %993 = vst [vmem:[%s3 + $0xa8] sm:$0xf] %v865
  %994 = vst [vmem:[%s3 + $0xac] sm:$0xf] %v866
  %995 = vst [vmem:[%s3 + $0xb0] sm:$0xf] %v867
  %996 = vst [vmem:[%s3 + $0xb4] sm:$0xf] %v868
  %997 = vst [vmem:[%s3 + $0xb8] sm:$0xf] %v869
  %998 = vst [vmem:[%s3 + $0xbc] sm:$0xf] %v870
  %999 = vst [vmem:[%s3 + $0xc0] sm:$0xf] %v871
  %1000 = vst [vmem:[%s3 + $0xc4] sm:$0xf] %v872
  %1001 = vst [vmem:[%s3 + $0xc8] sm:$0xf] %v873
  %1002 = vst [vmem:[%s3 + $0xcc] sm:$0xf] %v874
  %1003 = vst [vmem:[%s3 + $0xd0] sm:$0xf] %v875
  %1004 = vst [vmem:[%s3 + $0xd4] sm:$0xf] %v876
  %1005 = vst [vmem:[%s3 + $0xd8] sm:$0xf] %v877
  %1006 = vst [vmem:[%s3 + $0xdc] sm:$0xf] %v878
  %1007 = vst [vmem:[%s3 + $0xe0] sm:$0xf] %v879
  %1008 = vst [vmem:[%s3 + $0xe4] sm:$0xf] %v880
  %1009 = vst [vmem:[%s3 + $0xe8] sm:$0xf] %v881
  %1010 = vst [vmem:[%s3 + $0xec] sm:$0xf] %v882
  %1011 = vst [vmem:[%s3 + $0xf0] sm:$0xf] %v883
  %1012 = vst [vmem:[%s3 + $0xf4] sm:$0xf] %v884
  %1013 = vst [vmem:[%s3 + $0xf8] sm:$0xf] %v885
  %1014 = vst [vmem:[%s3 + $0xfc] sm:$0xf] %v886
  // Predicated region
  $region14: #{coarse_mask_head_forward.5} parent=0 // pred_check
    _
  $region15: #{coarse_mask_head_forward.5} parent=0 // pred_check_branch
    %1016 = sbr.rel (0) target = $region17
  $region16: #{coarse_mask_head_forward.5} parent=0 // pred_region
    _
  $region17: #{coarse_mask_head_forward.5} parent=0 // pred_fallthru
    _
  // Predicated region
  $region18: #{coarse_mask_head_forward.5} parent=0 // pred_check
    _
  $region19: #{coarse_mask_head_forward.5} parent=0 // pred_check_branch
    %1018 = sbr.rel (0) target = $region21
  $region20: #{coarse_mask_head_forward.5} parent=0 // pred_region
    _
  $region21: #{coarse_mask_head_forward.5} parent=0 // pred_fallthru
    _

// kernel: coarse_mask_head_forward.9
$region0: #{coarse_mask_head_forward.9}
  #allocation0 [shape = 'u32[]', space=smem, size = 0x4, offset = 0x4, fixed_abs, tag = 'smem constant byte address 0x4 - core index']
  #allocation1 [shape = 'u32[144,128]{1,0:T(1,128)}', space=vmem, size = 0x12000, scoped, tag = 'internal scratch']
  %s0 = inlined_call_operand.vmem [shape: bf16[16,128], index: 0, kind: input, shape index: {}]
  %s1 = inlined_call_operand.vmem [shape: bf16[128,256], index: 1, kind: input, shape index: {}]
  %s2 = inlined_call_operand.vmem [shape: f32[1,256], index: 2, kind: input, shape index: {}]
  %s3 = inlined_call_operand.vmem [shape: f32[16,256], index: 3, kind: output, shape index: {}]
  %s4 = sld [smem:[#allocation0]]
  $region22: #{coarse_mask_head_forward.9} parent=0
    _
  %s6 = ssub.s32 1, %s4
  %s7 = scalar_select 0, %s6, %s4
  // Predicated region
  $region2: #{coarse_mask_head_forward.9} parent=0 // pred_check
    _
  $region3: #{coarse_mask_head_forward.9} parent=0 // pred_check_branch
    %9 = sbr.rel (0) target = $region5
  $region4: #{coarse_mask_head_forward.9} parent=0 // pred_region
    _
  $region5: #{coarse_mask_head_forward.9} parent=0 // pred_fallthru
    _
  // Predicated region
  $region6: #{coarse_mask_head_forward.9} parent=0 // pred_check
    _
  $region7: #{coarse_mask_head_forward.9} parent=0 // pred_check_branch
    %11 = sbr.rel (0) target = $region9
  $region8: #{coarse_mask_head_forward.9} parent=0 // pred_region
    _
  $region9: #{coarse_mask_head_forward.9} parent=0 // pred_fallthru
    _
  // Predicated region
  $region10: #{coarse_mask_head_forward.9} parent=0 // pred_check
    _
  $region11: #{coarse_mask_head_forward.9} parent=0 // pred_check_branch
    %13 = sbr.rel (0) target = $region13
  $region12: #{coarse_mask_head_forward.9} parent=0 // pred_region
    _
  $region13: #{coarse_mask_head_forward.9} parent=0 // pred_fallthru
    _
  %v15 = vld [vmem:[%s0] sm:$0xf]
  %v16 = vld [vmem:[%s0 + $0x4] sm:$0xf]
  %v17 = vld [vmem:[%s1] sm:$0xff]
  %v18 = vld [vmem:[%s1 + $0x8] sm:$0xff]
  %v19 = vld [vmem:[%s1 + $0x10] sm:$0xff]
  %v20 = vld [vmem:[%s1 + $0x18] sm:$0xff]
  %v21 = vld [vmem:[%s1 + $0x20] sm:$0xff]
  %v22 = vld [vmem:[%s1 + $0x28] sm:$0xff]
  %v23 = vld [vmem:[%s1 + $0x30] sm:$0xff]
  %v24 = vld [vmem:[%s1 + $0x38] sm:$0xff]
  %v25 = vld [vmem:[%s1 + $0x40] sm:$0xff]
  %v26 = vld [vmem:[%s1 + $0x48] sm:$0xff]
  %v27 = vld [vmem:[%s1 + $0x50] sm:$0xff]
  %v28 = vld [vmem:[%s1 + $0x58] sm:$0xff]
  %v29 = vld [vmem:[%s1 + $0x60] sm:$0xff]
  %v30 = vld [vmem:[%s1 + $0x68] sm:$0xff]
  %v31 = vld [vmem:[%s1 + $0x70] sm:$0xff]
  %v32 = vld [vmem:[%s1 + $0x78] sm:$0xff]
  %v33 = vld [vmem:[%s2] sm:$0x3]
  %v35 = vlaneseq
  %v36 = vshrl.u32 %v35, 7
  %v37 = vsub.s32 0, %v36
  %v38 = vrot.slane %v33, %v37
  %v39 = vlaneseq
  %v40 = vshrl.u32 %v39, 7
  %v41 = vsub.s32 1, %v40
  %v42 = vrot.slane %v33, %v41
  %v47 = vunpack.c.l.b16 %v15
  %v48 = vunpack.c.l.b16 %v16
  %v49 = vpack.c.b16 %v48, %v47
  %v67 = vunpack.c.l.b16 %v17
  %v68 = vunpack.c.h.b16 %v17
  %v69 = vunpack.c.l.b16 %v18
  %v70 = vunpack.c.h.b16 %v18
  %v71 = vunpack.c.l.b16 %v19
  %v72 = vunpack.c.h.b16 %v19
  %v73 = vunpack.c.l.b16 %v20
  %v74 = vunpack.c.h.b16 %v20
  %v75 = vunpack.c.l.b16 %v21
  %v76 = vunpack.c.h.b16 %v21
  %v77 = vunpack.c.l.b16 %v22
  %v78 = vunpack.c.h.b16 %v22
  %v79 = vunpack.c.l.b16 %v23
  %v80 = vunpack.c.h.b16 %v23
  %v81 = vunpack.c.l.b16 %v24
  %v82 = vunpack.c.h.b16 %v24
  %v83 = vunpack.c.l.b16 %v25
  %v84 = vunpack.c.h.b16 %v25
  %v85 = vunpack.c.l.b16 %v26
  %v86 = vunpack.c.h.b16 %v26
  %v87 = vunpack.c.l.b16 %v27
  %v88 = vunpack.c.h.b16 %v27
  %v89 = vunpack.c.l.b16 %v28
  %v90 = vunpack.c.h.b16 %v28
  %v91 = vunpack.c.l.b16 %v29
  %v92 = vunpack.c.h.b16 %v29
  %v93 = vunpack.c.l.b16 %v30
  %v94 = vunpack.c.h.b16 %v30
  %v95 = vunpack.c.l.b16 %v31
  %v96 = vunpack.c.h.b16 %v31
  %v97 = vunpack.c.l.b16 %v32
  %v98 = vunpack.c.h.b16 %v32
  %v99 = vpack.c.b16 %v69, %v67
  %v100 = vpack.c.b16 %v70, %v68
  %v101 = vpack.c.b16 %v73, %v71
  %v102 = vpack.c.b16 %v74, %v72
  %v103 = vpack.c.b16 %v77, %v75
  %v104 = vpack.c.b16 %v78, %v76
  %v105 = vpack.c.b16 %v81, %v79
  %v106 = vpack.c.b16 %v82, %v80
  %v107 = vpack.c.b16 %v85, %v83
  %v108 = vpack.c.b16 %v86, %v84
  %v109 = vpack.c.b16 %v89, %v87
  %v110 = vpack.c.b16 %v90, %v88
  %v111 = vpack.c.b16 %v93, %v91
  %v112 = vpack.c.b16 %v94, %v92
  %v113 = vpack.c.b16 %v97, %v95
  %v114 = vpack.c.b16 %v98, %v96
  %131 = vmatprep.subr.bf16.mxu0 %v100
  %132 = vmatpush1.bf16.msra.mxu0 %v99
  %133 = vmatprep.subr.bf16.mxu0 %v102
  %134 = vmatpush1.bf16.msra.mxu0 %v101
  %135 = vmatprep.subr.bf16.mxu0 %v104
  %136 = vmatpush1.bf16.msra.mxu0 %v103
  %137 = vmatprep.subr.bf16.mxu0 %v106
  %138 = vmatpush1.bf16.msra.mxu0 %v105
  %139 = vmatprep.subr.bf16.mxu0 %v108
  %140 = vmatpush1.bf16.msra.mxu0 %v107
  %141 = vmatprep.subr.bf16.mxu0 %v110
  %142 = vmatpush1.bf16.msra.mxu0 %v109
  %143 = vmatprep.subr.bf16.mxu0 %v112
  %144 = vmatpush1.bf16.msra.mxu0 %v111
  %145 = vmatprep.subr.bf16.mxu0 %v114
  %146 = vmatpush1.bf16.msra.mxu0 %v113
  %147 = vmatprep.subr.bf16.mxu0 0
  %148 = vmatpush1.bf16.msra.mxu0 0
  %149 = vmatprep.subr.bf16.mxu0 0
  %150 = vmatpush1.bf16.msra.mxu0 0
  %151 = vmatprep.subr.bf16.mxu0 0
  %152 = vmatpush1.bf16.msra.mxu0 0
  %153 = vmatprep.subr.bf16.mxu0 0
  %154 = vmatpush1.bf16.msra.mxu0 0
  %155 = vmatprep.subr.bf16.mxu0 0
  %156 = vmatpush1.bf16.msra.mxu0 0
  %157 = vmatprep.subr.bf16.mxu0 0
  %158 = vmatpush1.bf16.msra.mxu0 0
  %159 = vmatprep.subr.bf16.mxu0 0
  %160 = vmatpush1.bf16.msra.mxu0 0
  %161 = vmatprep.subr.bf16.mxu0 0
  %162 = vmatpush1.bf16.msra.mxu0 0
  %163 = vmatprep.mubr.bf16.mxu0 0
  %164 = vmatmul.mubr.bf16.gmra.mrb[0].mxu0 %v49
  %v165 = vpop.f32.mrb[0].mxu0
  %v166 = vadd.f32 %v38, %v165
  %v167 = vpop.f32.mrb[0].mxu0
  %v168 = vadd.f32 %v42, %v167
  %v169 = vpop.f32.mrb[0].mxu0
  %v170 = vadd.f32 %v38, %v169
  %v171 = vpop.f32.mrb[0].mxu0
  %v172 = vadd.f32 %v42, %v171
  %173 = vdwg.mxu0
  %174 = vst [vmem:[%s3] sm:$0xff] %v166
  %175 = vst [vmem:[%s3 + $0x8] sm:$0xff] %v168
  %176 = vst [vmem:[%s3 + $0x10] sm:$0xff] %v170
  %177 = vst [vmem:[%s3 + $0x18] sm:$0xff] %v172
  // Predicated region
  $region14: #{coarse_mask_head_forward.9} parent=0 // pred_check
    _
  $region15: #{coarse_mask_head_forward.9} parent=0 // pred_check_branch
    %179 = sbr.rel (0) target = $region17
  $region16: #{coarse_mask_head_forward.9} parent=0 // pred_region
    _
  $region17: #{coarse_mask_head_forward.9} parent=0 // pred_fallthru
    _
  // Predicated region
  $region18: #{coarse_mask_head_forward.9} parent=0 // pred_check
    _
  $region19: #{coarse_mask_head_forward.9} parent=0 // pred_check_branch
    %181 = sbr.rel (0) target = $region21
  $region20: #{coarse_mask_head_forward.9} parent=0 // pred_region
    _
  $region21: #{coarse_mask_head_forward.9} parent=0 // pred_fallthru
    _

// kernel: coarse_mask_head_forward.6
$region0: #{coarse_mask_head_forward.6}
  #allocation0 [shape = 'u32[]', space=smem, size = 0x4, offset = 0x4, fixed_abs, tag = 'smem constant byte address 0x4 - core index']
  #allocation1 [shape = 'u32[144,128]{1,0:T(1,128)}', space=vmem, size = 0x12000, scoped, tag = 'internal scratch']
  %s0 = inlined_call_operand.vmem [shape: bf16[128,128], index: 0, kind: input, shape index: {}]
  %s1 = inlined_call_operand.vmem [shape: bf16[128,128], index: 1, kind: input, shape index: {}]
  %s2 = inlined_call_operand.vmem [shape: f32[1,128], index: 2, kind: input, shape index: {}]
  %s3 = inlined_call_operand.vmem [shape: bf16[128,128], index: 3, kind: output, shape index: {}]
  %s4 = sld [smem:[#allocation0]]
  $region22: #{coarse_mask_head_forward.6} parent=0
    _
  %s6 = ssub.s32 1, %s4
  %s7 = scalar_select 0, %s6, %s4
  // Predicated region
  $region2: #{coarse_mask_head_forward.6} parent=0 // pred_check
    _
  $region3: #{coarse_mask_head_forward.6} parent=0 // pred_check_branch
    %9 = sbr.rel (0) target = $region5
  $region4: #{coarse_mask_head_forward.6} parent=0 // pred_region
    _
  $region5: #{coarse_mask_head_forward.6} parent=0 // pred_fallthru
    _
  // Predicated region
  $region6: #{coarse_mask_head_forward.6} parent=0 // pred_check
    _
  $region7: #{coarse_mask_head_forward.6} parent=0 // pred_check_branch
    %11 = sbr.rel (0) target = $region9
  $region8: #{coarse_mask_head_forward.6} parent=0 // pred_region
    _
  $region9: #{coarse_mask_head_forward.6} parent=0 // pred_fallthru
    _
  // Predicated region
  $region10: #{coarse_mask_head_forward.6} parent=0 // pred_check
    _
  $region11: #{coarse_mask_head_forward.6} parent=0 // pred_check_branch
    %13 = sbr.rel (0) target = $region13
  $region12: #{coarse_mask_head_forward.6} parent=0 // pred_region
    _
  $region13: #{coarse_mask_head_forward.6} parent=0 // pred_fallthru
    _
  %v15 = vld [vmem:[%s0] sm:$0xf]
  %v16 = vld [vmem:[%s0 + $0x4] sm:$0xf]
  %v17 = vld [vmem:[%s0 + $0x8] sm:$0xf]
  %v18 = vld [vmem:[%s0 + $0xc] sm:$0xf]
  %v19 = vld [vmem:[%s0 + $0x10] sm:$0xf]
  %v20 = vld [vmem:[%s0 + $0x14] sm:$0xf]
  %v21 = vld [vmem:[%s0 + $0x18] sm:$0xf]
  %v22 = vld [vmem:[%s0 + $0x1c] sm:$0xf]
  %v23 = vld [vmem:[%s0 + $0x20] sm:$0xf]
  %v24 = vld [vmem:[%s0 + $0x24] sm:$0xf]
  %v25 = vld [vmem:[%s0 + $0x28] sm:$0xf]
  %v26 = vld [vmem:[%s0 + $0x2c] sm:$0xf]
  %v27 = vld [vmem:[%s0 + $0x30] sm:$0xf]
  %v28 = vld [vmem:[%s0 + $0x34] sm:$0xf]
  %v29 = vld [vmem:[%s0 + $0x38] sm:$0xf]
  %v30 = vld [vmem:[%s0 + $0x3c] sm:$0xf]
  %v31 = vld [vmem:[%s1] sm:$0xf]
  %v32 = vld [vmem:[%s1 + $0x4] sm:$0xf]
  %v33 = vld [vmem:[%s1 + $0x8] sm:$0xf]
  %v34 = vld [vmem:[%s1 + $0xc] sm:$0xf]
  %v35 = vld [vmem:[%s1 + $0x10] sm:$0xf]
  %v36 = vld [vmem:[%s1 + $0x14] sm:$0xf]
  %v37 = vld [vmem:[%s1 + $0x18] sm:$0xf]
  %v38 = vld [vmem:[%s1 + $0x1c] sm:$0xf]
  %v39 = vld [vmem:[%s1 + $0x20] sm:$0xf]
  %v40 = vld [vmem:[%s1 + $0x24] sm:$0xf]
  %v41 = vld [vmem:[%s1 + $0x28] sm:$0xf]
  %v42 = vld [vmem:[%s1 + $0x2c] sm:$0xf]
  %v43 = vld [vmem:[%s1 + $0x30] sm:$0xf]
  %v44 = vld [vmem:[%s1 + $0x34] sm:$0xf]
  %v45 = vld [vmem:[%s1 + $0x38] sm:$0xf]
  %v46 = vld [vmem:[%s1 + $0x3c] sm:$0xf]
  %v47 = vld [vmem:[%s2] sm:$0x1]
  %v49 = vlaneseq
  %v50 = vshrl.u32 %v49, 7
  %v51 = vsub.s32 0, %v50
  %v52 = vrot.slane %v47, %v51
  %v70 = vunpack.c.l.b16 %v15
  %v71 = vunpack.c.l.b16 %v16
  %v72 = vunpack.c.l.b16 %v17
  %v73 = vunpack.c.l.b16 %v18
  %v74 = vunpack.c.l.b16 %v19
  %v75 = vunpack.c.l.b16 %v20
  %v76 = vunpack.c.l.b16 %v21
  %v77 = vunpack.c.l.b16 %v22
  %v78 = vunpack.c.l.b16 %v23
  %v79 = vunpack.c.l.b16 %v24
  %v80 = vunpack.c.l.b16 %v25
  %v81 = vunpack.c.l.b16 %v26
  %v82 = vunpack.c.l.b16 %v27
  %v83 = vunpack.c.l.b16 %v28
  %v84 = vunpack.c.l.b16 %v29
  %v85 = vunpack.c.l.b16 %v30
  %v86 = vpack.c.b16 %v71, %v70
  %v87 = vpack.c.b16 %v73, %v72
  %v88 = vpack.c.b16 %v75, %v74
  %v89 = vpack.c.b16 %v77, %v76
  %v90 = vpack.c.b16 %v79, %v78
  %v91 = vpack.c.b16 %v81, %v80
  %v92 = vpack.c.b16 %v83, %v82
  %v93 = vpack.c.b16 %v85, %v84
  %v118 = vunpack.c.l.b16 %v31
  %v119 = vunpack.c.l.b16 %v32
  %v120 = vunpack.c.l.b16 %v33
  %v121 = vunpack.c.l.b16 %v34
  %v122 = vunpack.c.l.b16 %v35
  %v123 = vunpack.c.l.b16 %v36
  %v124 = vunpack.c.l.b16 %v37
  %v125 = vunpack.c.l.b16 %v38
  %v126 = vunpack.c.l.b16 %v39
  %v127 = vunpack.c.l.b16 %v40
  %v128 = vunpack.c.l.b16 %v41
  %v129 = vunpack.c.l.b16 %v42
  %v130 = vunpack.c.l.b16 %v43
  %v131 = vunpack.c.l.b16 %v44
  %v132 = vunpack.c.l.b16 %v45
  %v133 = vunpack.c.l.b16 %v46
  %v134 = vpack.c.b16 %v119, %v118
  %v135 = vpack.c.b16 %v121, %v120
  %v136 = vpack.c.b16 %v123, %v122
  %v137 = vpack.c.b16 %v125, %v124
  %v138 = vpack.c.b16 %v127, %v126
  %v139 = vpack.c.b16 %v129, %v128
  %v140 = vpack.c.b16 %v131, %v130
  %v141 = vpack.c.b16 %v133, %v132
  %150 = vmatprep.subr.bf16.mxu0 0
  %151 = vmatpush1.bf16.msra.mxu0 %v134
  %152 = vmatprep.subr.bf16.mxu0 0
  %153 = vmatpush1.bf16.msra.mxu0 %v135
  %154 = vmatprep.subr.bf16.mxu0 0
  %155 = vmatpush1.bf16.msra.mxu0 %v136
  %156 = vmatprep.subr.bf16.mxu0 0
  %157 = vmatpush1.bf16.msra.mxu0 %v137
  %158 = vmatprep.subr.bf16.mxu0 0
  %159 = vmatpush1.bf16.msra.mxu0 %v138
  %160 = vmatprep.subr.bf16.mxu0 0
  %161 = vmatpush1.bf16.msra.mxu0 %v139
  %162 = vmatprep.subr.bf16.mxu0 0
  %163 = vmatpush1.bf16.msra.mxu0 %v140
  %164 = vmatprep.subr.bf16.mxu0 0
  %165 = vmatpush1.bf16.msra.mxu0 %v141
  %166 = vmatprep.subr.bf16.mxu0 0
  %167 = vmatpush1.bf16.msra.mxu0 0
  %168 = vmatprep.subr.bf16.mxu0 0
  %169 = vmatpush1.bf16.msra.mxu0 0
  %170 = vmatprep.subr.bf16.mxu0 0
  %171 = vmatpush1.bf16.msra.mxu0 0
  %172 = vmatprep.subr.bf16.mxu0 0
  %173 = vmatpush1.bf16.msra.mxu0 0
  %174 = vmatprep.subr.bf16.mxu0 0
  %175 = vmatpush1.bf16.msra.mxu0 0
  %176 = vmatprep.subr.bf16.mxu0 0
  %177 = vmatpush1.bf16.msra.mxu0 0
  %178 = vmatprep.subr.bf16.mxu0 0
  %179 = vmatpush1.bf16.msra.mxu0 0
  %180 = vmatprep.subr.bf16.mxu0 0
  %181 = vmatpush1.bf16.msra.mxu0 0
  %182 = vmatprep.mubr.bf16.mxu0 0
  %183 = vmatmul.mubr.bf16.gmra.mrb[0].mxu0 %v86
  %v184 = vpop.f32.mrb[0].mxu0
  %v185 = vadd.f32 %v52, %v184
  %v186 = vpop.f32.mrb[0].mxu0
  %v187 = vpop.f32.mrb[0].mxu0
  %v188 = vadd.f32 %v52, %v187
  %v189 = vpop.f32.mrb[0].mxu0
  %190 = vmatprep.mubr.bf16.mxu0 0
  %191 = vmatmul.mubr.bf16.gmra.mrb[0].mxu0 %v87
  %v192 = vpop.f32.mrb[0].mxu0
  %v193 = vadd.f32 %v52, %v192
  %v194 = vpop.f32.mrb[0].mxu0
  %v195 = vpop.f32.mrb[0].mxu0
  %v196 = vadd.f32 %v52, %v195
  %v197 = vpop.f32.mrb[0].mxu0
  %198 = vmatprep.mubr.bf16.mxu0 0
  %199 = vmatmul.mubr.bf16.gmra.mrb[0].mxu0 %v88
  %v200 = vpop.f32.mrb[0].mxu0
  %v201 = vadd.f32 %v52, %v200
  %v202 = vpop.f32.mrb[0].mxu0
  %v203 = vpop.f32.mrb[0].mxu0
  %v204 = vadd.f32 %v52, %v203
  %v205 = vpop.f32.mrb[0].mxu0
  %206 = vmatprep.mubr.bf16.mxu0 0
  %207 = vmatmul.mubr.bf16.gmra.mrb[0].mxu0 %v89
  %v208 = vpop.f32.mrb[0].mxu0
  %v209 = vadd.f32 %v52, %v208
  %v210 = vpop.f32.mrb[0].mxu0
  %v211 = vpop.f32.mrb[0].mxu0
  %v212 = vadd.f32 %v52, %v211
  %v213 = vpop.f32.mrb[0].mxu0
  %214 = vmatprep.mubr.bf16.mxu0 0
  %215 = vmatmul.mubr.bf16.gmra.mrb[0].mxu0 %v90
  %v216 = vpop.f32.mrb[0].mxu0
  %v217 = vadd.f32 %v52, %v216
  %v218 = vpop.f32.mrb[0].mxu0
  %v219 = vpop.f32.mrb[0].mxu0
  %v220 = vadd.f32 %v52, %v219
  %v221 = vpop.f32.mrb[0].mxu0
  %222 = vmatprep.mubr.bf16.mxu0 0
  %223 = vmatmul.mubr.bf16.gmra.mrb[0].mxu0 %v91
  %v224 = vpop.f32.mrb[0].mxu0
  %v225 = vadd.f32 %v52, %v224
  %v226 = vpop.f32.mrb[0].mxu0
  %v227 = vpop.f32.mrb[0].mxu0
  %v228 = vadd.f32 %v52, %v227
  %v229 = vpop.f32.mrb[0].mxu0
  %230 = vmatprep.mubr.bf16.mxu0 0
  %231 = vmatmul.mubr.bf16.gmra.mrb[0].mxu0 %v92
  %v232 = vpop.f32.mrb[0].mxu0
  %v233 = vadd.f32 %v52, %v232
  %v234 = vpop.f32.mrb[0].mxu0
  %v235 = vpop.f32.mrb[0].mxu0
  %v236 = vadd.f32 %v52, %v235
  %v237 = vpop.f32.mrb[0].mxu0
  %238 = vmatprep.mubr.bf16.mxu0 0
  %239 = vmatmul.mubr.bf16.gmra.mrb[0].mxu0 %v93
  %v240 = vpop.f32.mrb[0].mxu0
  %v241 = vadd.f32 %v52, %v240
  %v242 = vpop.f32.mrb[0].mxu0
  %v243 = vpop.f32.mrb[0].mxu0
  %v244 = vadd.f32 %v52, %v243
  %v245 = vpop.f32.mrb[0].mxu0
  %246 = vdwg.mxu0
  %v247 = vmax.f32 %v185, 0.0
  %v248 = vmax.f32 %v188, 0.0
  %v249 = vmax.f32 %v193, 0.0
  %v250 = vmax.f32 %v196, 0.0
  %v251 = vmax.f32 %v201, 0.0
  %v252 = vmax.f32 %v204, 0.0
  %v253 = vmax.f32 %v209, 0.0
  %v254 = vmax.f32 %v212, 0.0
  %v255 = vmax.f32 %v217, 0.0
  %v256 = vmax.f32 %v220, 0.0
  %v257 = vmax.f32 %v225, 0.0
  %v258 = vmax.f32 %v228, 0.0
  %v259 = vmax.f32 %v233, 0.0
  %v260 = vmax.f32 %v236, 0.0
  %v261 = vmax.f32 %v241, 0.0
  %v262 = vmax.f32 %v244, 0.0
  %v263 = vpack.c.bf16 %v248, %v247
  %v264 = vpack.c.bf16 %v250, %v249
  %v265 = vpack.c.bf16 %v252, %v251
  %v266 = vpack.c.bf16 %v254, %v253
  %v267 = vpack.c.bf16 %v256, %v255
  %v268 = vpack.c.bf16 %v258, %v257
  %v269 = vpack.c.bf16 %v260, %v259
  %v270 = vpack.c.bf16 %v262, %v261
  %v279 = vunpack.c.l.b16 %v263
  %v280 = vunpack.c.h.b16 %v263
  %v281 = vunpack.c.l.b16 %v264
  %v282 = vunpack.c.h.b16 %v264
  %v283 = vunpack.c.l.b16 %v265
  %v284 = vunpack.c.h.b16 %v265
  %v285 = vunpack.c.l.b16 %v266
  %v286 = vunpack.c.h.b16 %v266
  %v287 = vunpack.c.l.b16 %v267
  %v288 = vunpack.c.h.b16 %v267
  %v289 = vunpack.c.l.b16 %v268
  %v290 = vunpack.c.h.b16 %v268
  %v291 = vunpack.c.l.b16 %v269
  %v292 = vunpack.c.h.b16 %v269
  %v293 = vunpack.c.l.b16 %v270
  %v294 = vunpack.c.h.b16 %v270
  %v295 = vpack.c.b16 %v279, %v279
  %v296 = vpack.c.b16 %v280, %v280
  %v297 = vpack.c.b16 %v281, %v281
  %v298 = vpack.c.b16 %v282, %v282
  %v299 = vpack.c.b16 %v283, %v283
  %v300 = vpack.c.b16 %v284, %v284
  %v301 = vpack.c.b16 %v285, %v285
  %v302 = vpack.c.b16 %v286, %v286
  %v303 = vpack.c.b16 %v287, %v287
  %v304 = vpack.c.b16 %v288, %v288
  %v305 = vpack.c.b16 %v289, %v289
  %v306 = vpack.c.b16 %v290, %v290
  %v307 = vpack.c.b16 %v291, %v291
  %v308 = vpack.c.b16 %v292, %v292
  %v309 = vpack.c.b16 %v293, %v293
  %v310 = vpack.c.b16 %v294, %v294
  %327 = vst [vmem:[%s3] sm:$0xf] %v295
  %328 = vst [vmem:[%s3 + $0x4] sm:$0xf] %v296
  %329 = vst [vmem:[%s3 + $0x8] sm:$0xf] %v297
  %330 = vst [vmem:[%s3 + $0xc] sm:$0xf] %v298
  %331 = vst [vmem:[%s3 + $0x10] sm:$0xf] %v299
  %332 = vst [vmem:[%s3 + $0x14] sm:$0xf] %v300
  %333 = vst [vmem:[%s3 + $0x18] sm:$0xf] %v301
  %334 = vst [vmem:[%s3 + $0x1c] sm:$0xf] %v302
  %335 = vst [vmem:[%s3 + $0x20] sm:$0xf] %v303
  %336 = vst [vmem:[%s3 + $0x24] sm:$0xf] %v304
  %337 = vst [vmem:[%s3 + $0x28] sm:$0xf] %v305
  %338 = vst [vmem:[%s3 + $0x2c] sm:$0xf] %v306
  %339 = vst [vmem:[%s3 + $0x30] sm:$0xf] %v307
  %340 = vst [vmem:[%s3 + $0x34] sm:$0xf] %v308
  %341 = vst [vmem:[%s3 + $0x38] sm:$0xf] %v309
  %342 = vst [vmem:[%s3 + $0x3c] sm:$0xf] %v310
  // Predicated region
  $region14: #{coarse_mask_head_forward.6} parent=0 // pred_check
    _
  $region15: #{coarse_mask_head_forward.6} parent=0 // pred_check_branch
    %344 = sbr.rel (0) target = $region17
  $region16: #{coarse_mask_head_forward.6} parent=0 // pred_region
    _
  $region17: #{coarse_mask_head_forward.6} parent=0 // pred_fallthru
    _
  // Predicated region
  $region18: #{coarse_mask_head_forward.6} parent=0 // pred_check
    _
  $region19: #{coarse_mask_head_forward.6} parent=0 // pred_check_branch
    %346 = sbr.rel (0) target = $region21
  $region20: #{coarse_mask_head_forward.6} parent=0 // pred_region
    _
  $region21: #{coarse_mask_head_forward.6} parent=0 // pred_fallthru
    _

// kernel: coarse_mask_head_forward.7
$region0: #{coarse_mask_head_forward.7}
  #allocation0 [shape = 'u32[]', space=smem, size = 0x4, offset = 0x4, fixed_abs, tag = 'smem constant byte address 0x4 - core index']
  #allocation1 [shape = 'u32[144,128]{1,0:T(1,128)}', space=vmem, size = 0x12000, scoped, tag = 'internal scratch']
  %s0 = inlined_call_operand.vmem [shape: bf16[16,256], index: 0, kind: input, shape index: {}]
  %s1 = inlined_call_operand.vmem [shape: bf16[256,128], index: 1, kind: input, shape index: {}]
  %s2 = inlined_call_operand.vmem [shape: f32[1,128], index: 2, kind: input, shape index: {}]
  %s3 = inlined_call_operand.vmem [shape: bf16[16,128], index: 3, kind: output, shape index: {}]
  %s4 = sld [smem:[#allocation0]]
  $region22: #{coarse_mask_head_forward.7} parent=0
    _
  %s6 = ssub.s32 1, %s4
  %s7 = scalar_select 0, %s6, %s4
  // Predicated region
  $region2: #{coarse_mask_head_forward.7} parent=0 // pred_check
    _
  $region3: #{coarse_mask_head_forward.7} parent=0 // pred_check_branch
    %9 = sbr.rel (0) target = $region5
  $region4: #{coarse_mask_head_forward.7} parent=0 // pred_region
    _
  $region5: #{coarse_mask_head_forward.7} parent=0 // pred_fallthru
    _
  // Predicated region
  $region6: #{coarse_mask_head_forward.7} parent=0 // pred_check
    _
  $region7: #{coarse_mask_head_forward.7} parent=0 // pred_check_branch
    %11 = sbr.rel (0) target = $region9
  $region8: #{coarse_mask_head_forward.7} parent=0 // pred_region
    _
  $region9: #{coarse_mask_head_forward.7} parent=0 // pred_fallthru
    _
  // Predicated region
  $region10: #{coarse_mask_head_forward.7} parent=0 // pred_check
    _
  $region11: #{coarse_mask_head_forward.7} parent=0 // pred_check_branch
    %13 = sbr.rel (0) target = $region13
  $region12: #{coarse_mask_head_forward.7} parent=0 // pred_region
    _
  $region13: #{coarse_mask_head_forward.7} parent=0 // pred_fallthru
    _
  %v15 = vld [vmem:[%s0] sm:$0xff]
  %v16 = vld [vmem:[%s0 + $0x8] sm:$0xff]
  %v17 = vld [vmem:[%s1] sm:$0xf]
  %v18 = vld [vmem:[%s1 + $0x4] sm:$0xf]
  %v19 = vld [vmem:[%s1 + $0x8] sm:$0xf]
  %v20 = vld [vmem:[%s1 + $0xc] sm:$0xf]
  %v21 = vld [vmem:[%s1 + $0x10] sm:$0xf]
  %v22 = vld [vmem:[%s1 + $0x14] sm:$0xf]
  %v23 = vld [vmem:[%s1 + $0x18] sm:$0xf]
  %v24 = vld [vmem:[%s1 + $0x1c] sm:$0xf]
  %v25 = vld [vmem:[%s1 + $0x20] sm:$0xf]
  %v26 = vld [vmem:[%s1 + $0x24] sm:$0xf]
  %v27 = vld [vmem:[%s1 + $0x28] sm:$0xf]
  %v28 = vld [vmem:[%s1 + $0x2c] sm:$0xf]
  %v29 = vld [vmem:[%s1 + $0x30] sm:$0xf]
  %v30 = vld [vmem:[%s1 + $0x34] sm:$0xf]
  %v31 = vld [vmem:[%s1 + $0x38] sm:$0xf]
  %v32 = vld [vmem:[%s1 + $0x3c] sm:$0xf]
  %v33 = vld [vmem:[%s1 + $0x40] sm:$0xf]
  %v34 = vld [vmem:[%s1 + $0x44] sm:$0xf]
  %v35 = vld [vmem:[%s1 + $0x48] sm:$0xf]
  %v36 = vld [vmem:[%s1 + $0x4c] sm:$0xf]
  %v37 = vld [vmem:[%s1 + $0x50] sm:$0xf]
  %v38 = vld [vmem:[%s1 + $0x54] sm:$0xf]
  %v39 = vld [vmem:[%s1 + $0x58] sm:$0xf]
  %v40 = vld [vmem:[%s1 + $0x5c] sm:$0xf]
  %v41 = vld [vmem:[%s1 + $0x60] sm:$0xf]
  %v42 = vld [vmem:[%s1 + $0x64] sm:$0xf]
  %v43 = vld [vmem:[%s1 + $0x68] sm:$0xf]
  %v44 = vld [vmem:[%s1 + $0x6c] sm:$0xf]
  %v45 = vld [vmem:[%s1 + $0x70] sm:$0xf]
  %v46 = vld [vmem:[%s1 + $0x74] sm:$0xf]
  %v47 = vld [vmem:[%s1 + $0x78] sm:$0xf]
  %v48 = vld [vmem:[%s1 + $0x7c] sm:$0xf]
  %v49 = vld [vmem:[%s2] sm:$0x1]
  %v51 = vlaneseq
  %v52 = vshrl.u32 %v51, 7
  %v53 = vsub.s32 0, %v52
  %v54 = vrot.slane %v49, %v53
  %v58 = vunpack.c.l.b16 %v15
  %v59 = vunpack.c.h.b16 %v15
  %v60 = vunpack.c.l.b16 %v16
  %v61 = vunpack.c.h.b16 %v16
  %v62 = vpack.c.b16 %v60, %v58
  %v63 = vpack.c.b16 %v61, %v59
  %v98 = vunpack.c.l.b16 %v17
  %v99 = vunpack.c.l.b16 %v18
  %v100 = vunpack.c.l.b16 %v19
  %v101 = vunpack.c.l.b16 %v20
  %v102 = vunpack.c.l.b16 %v21
  %v103 = vunpack.c.l.b16 %v22
  %v104 = vunpack.c.l.b16 %v23
  %v105 = vunpack.c.l.b16 %v24
  %v106 = vunpack.c.l.b16 %v25
  %v107 = vunpack.c.l.b16 %v26
  %v108 = vunpack.c.l.b16 %v27
  %v109 = vunpack.c.l.b16 %v28
  %v110 = vunpack.c.l.b16 %v29
  %v111 = vunpack.c.l.b16 %v30
  %v112 = vunpack.c.l.b16 %v31
  %v113 = vunpack.c.l.b16 %v32
  %v114 = vunpack.c.l.b16 %v33
  %v115 = vunpack.c.l.b16 %v34
  %v116 = vunpack.c.l.b16 %v35
  %v117 = vunpack.c.l.b16 %v36
  %v118 = vunpack.c.l.b16 %v37
  %v119 = vunpack.c.l.b16 %v38
  %v120 = vunpack.c.l.b16 %v39
  %v121 = vunpack.c.l.b16 %v40
  %v122 = vunpack.c.l.b16 %v41
  %v123 = vunpack.c.l.b16 %v42
  %v124 = vunpack.c.l.b16 %v43
  %v125 = vunpack.c.l.b16 %v44
  %v126 = vunpack.c.l.b16 %v45
  %v127 = vunpack.c.l.b16 %v46
  %v128 = vunpack.c.l.b16 %v47
  %v129 = vunpack.c.l.b16 %v48
  %v130 = vpack.c.b16 %v99, %v98
  %v131 = vpack.c.b16 %v101, %v100
  %v132 = vpack.c.b16 %v103, %v102
  %v133 = vpack.c.b16 %v105, %v104
  %v134 = vpack.c.b16 %v107, %v106
  %v135 = vpack.c.b16 %v109, %v108
  %v136 = vpack.c.b16 %v111, %v110
  %v137 = vpack.c.b16 %v113, %v112
  %v138 = vpack.c.b16 %v115, %v114
  %v139 = vpack.c.b16 %v117, %v116
  %v140 = vpack.c.b16 %v119, %v118
  %v141 = vpack.c.b16 %v121, %v120
  %v142 = vpack.c.b16 %v123, %v122
  %v143 = vpack.c.b16 %v125, %v124
  %v144 = vpack.c.b16 %v127, %v126
  %v145 = vpack.c.b16 %v129, %v128
  %162 = vmatprep.subr.bf16.mxu0 0
  %163 = vmatpush1.bf16.msra.mxu0 %v130
  %164 = vmatprep.subr.bf16.mxu0 0
  %165 = vmatpush1.bf16.msra.mxu0 %v131
  %166 = vmatprep.subr.bf16.mxu0 0
  %167 = vmatpush1.bf16.msra.mxu0 %v132
  %168 = vmatprep.subr.bf16.mxu0 0
  %169 = vmatpush1.bf16.msra.mxu0 %v133
  %170 = vmatprep.subr.bf16.mxu0 0
  %171 = vmatpush1.bf16.msra.mxu0 %v134
  %172 = vmatprep.subr.bf16.mxu0 0
  %173 = vmatpush1.bf16.msra.mxu0 %v135
  %174 = vmatprep.subr.bf16.mxu0 0
  %175 = vmatpush1.bf16.msra.mxu0 %v136
  %176 = vmatprep.subr.bf16.mxu0 0
  %177 = vmatpush1.bf16.msra.mxu0 %v137
  %178 = vmatprep.subr.bf16.mxu0 0
  %179 = vmatpush1.bf16.msra.mxu0 %v138
  %180 = vmatprep.subr.bf16.mxu0 0
  %181 = vmatpush1.bf16.msra.mxu0 %v139
  %182 = vmatprep.subr.bf16.mxu0 0
  %183 = vmatpush1.bf16.msra.mxu0 %v140
  %184 = vmatprep.subr.bf16.mxu0 0
  %185 = vmatpush1.bf16.msra.mxu0 %v141
  %186 = vmatprep.subr.bf16.mxu0 0
  %187 = vmatpush1.bf16.msra.mxu0 %v142
  %188 = vmatprep.subr.bf16.mxu0 0
  %189 = vmatpush1.bf16.msra.mxu0 %v143
  %190 = vmatprep.subr.bf16.mxu0 0
  %191 = vmatpush1.bf16.msra.mxu0 %v144
  %192 = vmatprep.subr.bf16.mxu0 0
  %193 = vmatpush1.bf16.msra.mxu0 %v145
  %194 = vmatprep.mubr.bf16.mxu0 %v63
  %195 = vmatmul.mubr.bf16.gmra.mrb[0].mxu0 %v62
  %v196 = vpop.f32.mrb[0].mxu0
  %v197 = vadd.f32 %v54, %v196
  %v198 = vpop.f32.mrb[0].mxu0
  %v199 = vpop.f32.mrb[0].mxu0
  %v200 = vadd.f32 %v54, %v199
  %v201 = vpop.f32.mrb[0].mxu0
  %202 = vdwg.mxu0
  %v203 = vmax.f32 %v197, 0.0
  %v204 = vmax.f32 %v200, 0.0
  %v205 = vpack.c.bf16 %v204, %v203
  %v207 = vunpack.c.l.b16 %v205
  %v208 = vunpack.c.h.b16 %v205
  %v209 = vpack.c.b16 %v207, %v207
  %v210 = vpack.c.b16 %v208, %v208
  %213 = vst [vmem:[%s3] sm:$0xf] %v209
  %214 = vst [vmem:[%s3 + $0x4] sm:$0xf] %v210
  // Predicated region
  $region14: #{coarse_mask_head_forward.7} parent=0 // pred_check
    _
  $region15: #{coarse_mask_head_forward.7} parent=0 // pred_check_branch
    %216 = sbr.rel (0) target = $region17
  $region16: #{coarse_mask_head_forward.7} parent=0 // pred_region
    _
  $region17: #{coarse_mask_head_forward.7} parent=0 // pred_fallthru
    _
  // Predicated region
  $region18: #{coarse_mask_head_forward.7} parent=0 // pred_check
    _
  $region19: #{coarse_mask_head_forward.7} parent=0 // pred_check_branch
    %218 = sbr.rel (0) target = $region21
  $region20: #{coarse_mask_head_forward.7} parent=0 // pred_region
    _
  $region21: #{coarse_mask_head_forward.7} parent=0 // pred_fallthru
    _

// kernel: coarse_mask_head_forward.8
$region0: #{coarse_mask_head_forward.8}
  #allocation0 [shape = 'u32[]', space=smem, size = 0x4, offset = 0x4, fixed_abs, tag = 'smem constant byte address 0x4 - core index']
  #allocation1 [shape = 'u32[144,128]{1,0:T(1,128)}', space=vmem, size = 0x12000, scoped, tag = 'internal scratch']
  %s0 = inlined_call_operand.vmem [shape: bf16[16,128], index: 0, kind: input, shape index: {}]
  %s1 = inlined_call_operand.vmem [shape: bf16[128,128], index: 1, kind: input, shape index: {}]
  %s2 = inlined_call_operand.vmem [shape: f32[1,128], index: 2, kind: input, shape index: {}]
  %s3 = inlined_call_operand.vmem [shape: bf16[16,128], index: 3, kind: output, shape index: {}]
  %s4 = sld [smem:[#allocation0]]
  $region22: #{coarse_mask_head_forward.8} parent=0
    _
  %s6 = ssub.s32 1, %s4
  %s7 = scalar_select 0, %s6, %s4
  // Predicated region
  $region2: #{coarse_mask_head_forward.8} parent=0 // pred_check
    _
  $region3: #{coarse_mask_head_forward.8} parent=0 // pred_check_branch
    %9 = sbr.rel (0) target = $region5
  $region4: #{coarse_mask_head_forward.8} parent=0 // pred_region
    _
  $region5: #{coarse_mask_head_forward.8} parent=0 // pred_fallthru
    _
  // Predicated region
  $region6: #{coarse_mask_head_forward.8} parent=0 // pred_check
    _
  $region7: #{coarse_mask_head_forward.8} parent=0 // pred_check_branch
    %11 = sbr.rel (0) target = $region9
  $region8: #{coarse_mask_head_forward.8} parent=0 // pred_region
    _
  $region9: #{coarse_mask_head_forward.8} parent=0 // pred_fallthru
    _
  // Predicated region
  $region10: #{coarse_mask_head_forward.8} parent=0 // pred_check
    _
  $region11: #{coarse_mask_head_forward.8} parent=0 // pred_check_branch
    %13 = sbr.rel (0) target = $region13
  $region12: #{coarse_mask_head_forward.8} parent=0 // pred_region
    _
  $region13: #{coarse_mask_head_forward.8} parent=0 // pred_fallthru
    _
  %v15 = vld [vmem:[%s0] sm:$0xf]
  %v16 = vld [vmem:[%s0 + $0x4] sm:$0xf]
  %v17 = vld [vmem:[%s1] sm:$0xf]
  %v18 = vld [vmem:[%s1 + $0x4] sm:$0xf]
  %v19 = vld [vmem:[%s1 + $0x8] sm:$0xf]
  %v20 = vld [vmem:[%s1 + $0xc] sm:$0xf]
  %v21 = vld [vmem:[%s1 + $0x10] sm:$0xf]
  %v22 = vld [vmem:[%s1 + $0x14] sm:$0xf]
  %v23 = vld [vmem:[%s1 + $0x18] sm:$0xf]
  %v24 = vld [vmem:[%s1 + $0x1c] sm:$0xf]
  %v25 = vld [vmem:[%s1 + $0x20] sm:$0xf]
  %v26 = vld [vmem:[%s1 + $0x24] sm:$0xf]
  %v27 = vld [vmem:[%s1 + $0x28] sm:$0xf]
  %v28 = vld [vmem:[%s1 + $0x2c] sm:$0xf]
  %v29 = vld [vmem:[%s1 + $0x30] sm:$0xf]
  %v30 = vld [vmem:[%s1 + $0x34] sm:$0xf]
  %v31 = vld [vmem:[%s1 + $0x38] sm:$0xf]
  %v32 = vld [vmem:[%s1 + $0x3c] sm:$0xf]
  %v33 = vld [vmem:[%s2] sm:$0x1]
  %v35 = vlaneseq
  %v36 = vshrl.u32 %v35, 7
  %v37 = vsub.s32 0, %v36
  %v38 = vrot.slane %v33, %v37
  %v42 = vunpack.c.l.b16 %v15
  %v43 = vunpack.c.l.b16 %v16
  %v44 = vpack.c.b16 %v43, %v42
  %v62 = vunpack.c.l.b16 %v17
  %v63 = vunpack.c.l.b16 %v18
  %v64 = vunpack.c.l.b16 %v19
  %v65 = vunpack.c.l.b16 %v20
  %v66 = vunpack.c.l.b16 %v21
  %v67 = vunpack.c.l.b16 %v22
  %v68 = vunpack.c.l.b16 %v23
  %v69 = vunpack.c.l.b16 %v24
  %v70 = vunpack.c.l.b16 %v25
  %v71 = vunpack.c.l.b16 %v26
  %v72 = vunpack.c.l.b16 %v27
  %v73 = vunpack.c.l.b16 %v28
  %v74 = vunpack.c.l.b16 %v29
  %v75 = vunpack.c.l.b16 %v30
  %v76 = vunpack.c.l.b16 %v31
  %v77 = vunpack.c.l.b16 %v32
  %v78 = vpack.c.b16 %v63, %v62
  %v79 = vpack.c.b16 %v65, %v64
  %v80 = vpack.c.b16 %v67, %v66
  %v81 = vpack.c.b16 %v69, %v68
  %v82 = vpack.c.b16 %v71, %v70
  %v83 = vpack.c.b16 %v73, %v72
  %v84 = vpack.c.b16 %v75, %v74
  %v85 = vpack.c.b16 %v77, %v76
  %94 = vmatprep.subr.bf16.mxu0 0
  %95 = vmatpush1.bf16.msra.mxu0 %v78
  %96 = vmatprep.subr.bf16.mxu0 0
  %97 = vmatpush1.bf16.msra.mxu0 %v79
  %98 = vmatprep.subr.bf16.mxu0 0
  %99 = vmatpush1.bf16.msra.mxu0 %v80
  %100 = vmatprep.subr.bf16.mxu0 0
  %101 = vmatpush1.bf16.msra.mxu0 %v81
  %102 = vmatprep.subr.bf16.mxu0 0
  %103 = vmatpush1.bf16.msra.mxu0 %v82
  %104 = vmatprep.subr.bf16.mxu0 0
  %105 = vmatpush1.bf16.msra.mxu0 %v83
  %106 = vmatprep.subr.bf16.mxu0 0
  %107 = vmatpush1.bf16.msra.mxu0 %v84
  %108 = vmatprep.subr.bf16.mxu0 0
  %109 = vmatpush1.bf16.msra.mxu0 %v85
  %110 = vmatprep.subr.bf16.mxu0 0
  %111 = vmatpush1.bf16.msra.mxu0 0
  %112 = vmatprep.subr.bf16.mxu0 0
  %113 = vmatpush1.bf16.msra.mxu0 0
  %114 = vmatprep.subr.bf16.mxu0 0
  %115 = vmatpush1.bf16.msra.mxu0 0
  %116 = vmatprep.subr.bf16.mxu0 0
  %117 = vmatpush1.bf16.msra.mxu0 0
  %118 = vmatprep.subr.bf16.mxu0 0
  %119 = vmatpush1.bf16.msra.mxu0 0
  %120 = vmatprep.subr.bf16.mxu0 0
  %121 = vmatpush1.bf16.msra.mxu0 0
  %122 = vmatprep.subr.bf16.mxu0 0
  %123 = vmatpush1.bf16.msra.mxu0 0
  %124 = vmatprep.subr.bf16.mxu0 0
  %125 = vmatpush1.bf16.msra.mxu0 0
  %126 = vmatprep.mubr.bf16.mxu0 0
  %127 = vmatmul.mubr.bf16.gmra.mrb[0].mxu0 %v44
  %v128 = vpop.f32.mrb[0].mxu0
  %v129 = vadd.f32 %v38, %v128
  %v130 = vpop.f32.mrb[0].mxu0
  %v131 = vpop.f32.mrb[0].mxu0
  %v132 = vadd.f32 %v38, %v131
  %v133 = vpop.f32.mrb[0].mxu0
  %134 = vdwg.mxu0
  %v135 = vmax.f32 %v129, 0.0
  %v136 = vmax.f32 %v132, 0.0
  %v137 = vpack.c.bf16 %v136, %v135
  %v139 = vunpack.c.l.b16 %v137
  %v140 = vunpack.c.h.b16 %v137
  %v141 = vpack.c.b16 %v139, %v139
  %v142 = vpack.c.b16 %v140, %v140
  %145 = vst [vmem:[%s3] sm:$0xf] %v141
  %146 = vst [vmem:[%s3 + $0x4] sm:$0xf] %v142
  // Predicated region
  $region14: #{coarse_mask_head_forward.8} parent=0 // pred_check
    _
  $region15: #{coarse_mask_head_forward.8} parent=0 // pred_check_branch
    %148 = sbr.rel (0) target = $region17
  $region16: #{coarse_mask_head_forward.8} parent=0 // pred_region
    _
  $region17: #{coarse_mask_head_forward.8} parent=0 // pred_fallthru
    _
  // Predicated region
  $region18: #{coarse_mask_head_forward.8} parent=0 // pred_check
    _
  $region19: #{coarse_mask_head_forward.8} parent=0 // pred_check_branch
    %150 = sbr.rel (0) target = $region21
  $region20: #{coarse_mask_head_forward.8} parent=0 // pred_region
    _
  $region21: #{coarse_mask_head_forward.8} parent=0 // pred_fallthru
    _

</llo_original>
